<compile_context>
chip_gen: v6e
topology: v6e:2x2x1
jax: 0.10.0
libtpu: 0.0.40
codegen_flags: <defaults>
</compile_context>

<pallas_src>
import functools

import jax
import jax.numpy as jnp
from jax.experimental import pallas as pl
from jax.experimental.pallas import tpu as pltpu


# ----------------------------- Pallas LSTM kernel -----------------------------

def _lstm_kernel(xg_ref, whh_ref, out_ref, c_out_ref, h_scr, c_scr,
                 *, t_block, hp):
    """LSTM recurrence over one (batch-block, time-block) tile.

    xg_ref    : (Tb, Bt, 4*Hp) f32   pre-projected input gates  x_t @ W_ih^T + b
    whh_ref   : (Hp, 4*Hp)     bf16  hidden->gate weights, whole array in VMEM
    out_ref   : (Tb, Bt, Hp)   f32   per-step hidden outputs (time-major)
    c_out_ref : (Bt, Hp)       f32   final cell state (resident across time axis)
    h_scr     : (Bt, Hp)       f32   recurrent hidden state carried across blocks
    c_scr     : (Bt, Hp)       f32   recurrent cell   state carried across blocks
    Gate order follows PyTorch: [i, f, g, o], each gate padded to Hp lanes.
    """
    t_blk = pl.program_id(1)

    @pl.when(t_blk == 0)
    def _():
        h_scr[...] = jnp.zeros_like(h_scr)
        c_scr[...] = jnp.zeros_like(c_scr)

    def step(tt, carry):
        h_prev, c_prev = carry
        xg = xg_ref[tt]                                           # (Bt, 4Hp) f32
        # Single small MXU push per step: bf16 operands, f32 accumulation.
        hg = jnp.dot(h_prev.astype(jnp.bfloat16), whh_ref[...],
                     preferred_element_type=jnp.float32)          # (Bt, 4Hp) f32
        gates = xg + hg
        # 128-lane-aligned gate slices; activations stay in f32 (v5e-safe).
        i_g = jax.nn.sigmoid(gates[:, 0 * hp:1 * hp])
        f_g = jax.nn.sigmoid(gates[:, 1 * hp:2 * hp])
        g_g = jnp.tanh(gates[:, 2 * hp:3 * hp])
        o_g = jax.nn.sigmoid(gates[:, 3 * hp:4 * hp])
        c = f_g * c_prev + i_g * g_g
        h = o_g * jnp.tanh(c)
        out_ref[tt] = h.astype(out_ref.dtype)
        return (h, c)

    h_fin, c_fin = jax.lax.fori_loop(
        0, t_block, step, (h_scr[...], c_scr[...]), unroll=True)

    h_scr[...] = h_fin
    c_scr[...] = c_fin
    # Written unconditionally every time block; the resident output block is
    # flushed to HBM with the value from the LAST time block of this batch
    # block, i.e. the final cell state (robust, no when-gating required).
    c_out_ref[...] = c_fin


def lstm_pallas(xg_tm, whh_t_pad, *, hidden_pad, t_block, batch_block):
    """xg_tm: (T, B, 4*Hp) pre-projected gates, time-major, bias folded in.
    whh_t_pad: (Hp, 4*Hp) bf16.  Returns (out_tm (T, B, Hp), c_n (B, Hp))."""
    T, B, G = xg_tm.shape
    Hp = hidden_pad
    assert G == 4 * Hp
    assert T % t_block == 0 and B % batch_block == 0

    kernel = functools.partial(_lstm_kernel, t_block=t_block, hp=Hp)

    out_tm, c_n = pl.pallas_call(
        kernel,
        out_shape=(
            jax.ShapeDtypeStruct((T, B, Hp), jnp.float32),
            jax.ShapeDtypeStruct((B, Hp), jnp.float32),
        ),
        grid_spec=pltpu.PrefetchScalarGridSpec(
            num_scalar_prefetch=0,
            grid=(B // batch_block, T // t_block),
            in_specs=[
                # Pre-projected gates: streamed per (batch, time) block.
                pl.BlockSpec((t_block, batch_block, 4 * Hp),
                             lambda b, t: (t, b, 0)),
                # Recurrent weights: whole array resident in VMEM (loaded once,
                # single copy — not re-streamed / double-buffered per step).
                pl.BlockSpec(memory_space=pltpu.MemorySpace.VMEM),
            ],
            out_specs=(
                pl.BlockSpec((t_block, batch_block, Hp),
                             lambda b, t: (t, b, 0)),
                # Final cell state: block index constant along time -> resident.
                pl.BlockSpec((batch_block, Hp), lambda b, t: (b, 0)),
            ),
            scratch_shapes=[
                pltpu.VMEM((batch_block, Hp), jnp.float32),   # h carry
                pltpu.VMEM((batch_block, Hp), jnp.float32),   # c carry
            ],
        ),
        compiler_params=pltpu.CompilerParams(
            # Batch blocks are independent (v7x: 2 TCs); time is sequential.
            dimension_semantics=("parallel", "arbitrary")),
    )(xg_tm, whh_t_pad)
    return out_tm, c_n


# --------------------------- weight prep / wrapper -----------------------------

def _pick_time_block(T, cap=16):
    """Largest divisor of T that is <= cap (timesteps per grid step)."""
    for tb in range(min(T, cap), 0, -1):
        if T % tb == 0:
            return tb
    return 1


def _prepare_lstm_weights(w_ih, w_hh, b_ih, b_hh, hidden_size, hidden_pad):
    """Pad each gate block to `hidden_pad` lanes (zero padding -> exact result)."""
    H, Hp = hidden_size, hidden_pad
    E = w_ih.shape[1]
    wih_t = jnp.zeros((E, 4 * Hp), jnp.float32)
    whh_t = jnp.zeros((Hp, 4 * Hp), jnp.float32)
    bias = jnp.zeros((4 * Hp,), jnp.float32)
    for k in range(4):                      # PyTorch gate order [i, f, g, o]
        wih_t = wih_t.at[:, k * Hp:k * Hp + H].set(w_ih[k * H:(k + 1) * H, :].T)
        whh_t = whh_t.at[:H, k * Hp:k * Hp + H].set(w_hh[k * H:(k + 1) * H, :].T)
        bias = bias.at[k * Hp:k * Hp + H].set(b_ih[k * H:(k + 1) * H]
                                              + b_hh[k * H:(k + 1) * H])
    return wih_t, whh_t.astype(jnp.bfloat16), bias


def encoder_forward(params, input_src):
    """Equivalent of Encoder.forward(input_src). Returns (outputs, (h, c))."""
    H = params["w_hh"].shape[1]
    E = params["w_ih"].shape[1]
    B, T = input_src.shape
    Hp = max(128, -(-H // 128) * 128)        # pad hidden/gate lane axis to 128

    t_block = _pick_time_block(T)
    # Split batch across TensorCores only if each block keeps >= 8 sublane rows.
    batch_block = B // 2 if (B % 2 == 0 and (B // 2) % 8 == 0) else B

    wih_t_p, whh_t_p, bias_p = _prepare_lstm_weights(
        params["w_ih"], params["w_hh"], params["b_ih"], params["b_hh"], H, Hp)

    # Embedding lookup produced time-major directly (gather with transposed
    # indices -> no (B,T,E)->(T,B,E) transpose of the activation tensor).
    # opt.dropout == 0 -> no dropout module, matching the PyTorch __init__ branch.
    emb_tm = jnp.take(params["embedding"], input_src.T, axis=0)      # (T, B, E)

    # Hoisted input projection: one large parallel matmul over all T*B rows,
    # outside the sequential recurrence (bias folded in).  Kept f32 here for
    # accuracy; at realistic sizes cast to bf16 to halve the streamed bytes.
    xg_tm = (jnp.dot(emb_tm.reshape(T * B, E), wih_t_p,
                     preferred_element_type=jnp.float32)
             + bias_p).reshape(T, B, 4 * Hp)

    out_tm, c_pad = lstm_pallas(xg_tm, whh_t_p, hidden_pad=Hp,
                                t_block=t_block, batch_block=batch_block)

    outputs = jnp.transpose(out_tm, (1, 0, 2))[:, :, :H]   # (B, T, H) batch_first
    h_n = out_tm[T - 1, :, :H][None]                       # (1, B, H) == outputs[:, -1]
    c_n = c_pad[:, :H][None]                               # (1, B, H)
    return outputs, (h_n, c_n)


# --------------------------- deterministic parameters --------------------------

def init_params(key, vocab_size, embedding_size, hidden_size, init_weight=0.1):
    ks = jax.random.split(key, 5)

    def uni(k, shape):
        # matches init.uniform_(param, -init_weight, init_weight)
        return jax.random.uniform(k, shape, jnp.float32, -init_weight, init_weight)

    return {
        # Embedding.from_pretrained(weights_matrix): (len(w2i), hidden_size)
        "embedding": jax.random.normal(ks[0], (vocab_size, hidden_size), jnp.float32),
        # nn.LSTM(embedding_size, hidden_size) parameters, gate order [i, f, g, o]
        "w_ih": uni(ks[1], (4 * hidden_size, embedding_size)),
        "w_hh": uni(ks[2], (4 * hidden_size, hidden_size)),
        "b_ih": uni(ks[3], (4 * hidden_size,)),
        "b_hh": uni(ks[4], (4 * hidden_size,)),
    }


# ------------------------------ pure-JAX reference -----------------------------

def reference_forward(params, input_src):
    emb = jnp.take(params["embedding"], input_src, axis=0)
    x_tm = jnp.transpose(emb, (1, 0, 2))
    B = input_src.shape[0]
    H = params["w_hh"].shape[1]
    wih_t, whh_t = params["w_ih"].T, params["w_hh"].T
    b = params["b_ih"] + params["b_hh"]

    def step(carry, x):
        h, c = carry
        gates = x @ wih_t + h @ whh_t + b
        i, f, g, o = jnp.split(gates, 4, axis=-1)
        c = jax.nn.sigmoid(f) * c + jax.nn.sigmoid(i) * jnp.tanh(g)
        h = jax.nn.sigmoid(o) * jnp.tanh(c)
        return (h, c), h

    h0 = jnp.zeros((B, H), jnp.float32)
    (h_n, c_n), outs = jax.lax.scan(step, (h0, h0), x_tm)
    return jnp.transpose(outs, (1, 0, 2)), h_n[None], c_n[None]


# ------------------------------------ main -------------------------------------

if __name__ == "__main__":
    VOCAB = 20        # len(w2i)
    B, T = 2, 8       # batch, sequence length
    E = H = 32        # opt.embedding_size == opt.hidden_size (pretrained emb width)

    key = jax.random.PRNGKey(0)
    pkey, ikey = jax.random.split(key)
    params = init_params(pkey, VOCAB, E, H, init_weight=0.1)
    input_src = jax.random.randint(ikey, (B, T), 0, VOCAB, dtype=jnp.int32)

    fwd = jax.jit(encoder_forward)
    outputs, (h_n, c_n) = fwd(params, input_src)
    jax.block_until_ready((outputs, h_n, c_n))

    assert outputs.shape == (B, T, H)
    assert h_n.shape == (1, B, H) and c_n.shape == (1, B, H)

    ref_out, ref_h, ref_c = reference_forward(params, input_src)
    # bf16 recurrent weights (f32 accumulation) -> slightly looser tolerance.
    assert jnp.allclose(outputs, ref_out, atol=5e-3, rtol=5e-3)
    assert jnp.allclose(h_n, ref_h, atol=5e-3, rtol=5e-3)
    assert jnp.allclose(c_n, ref_c, atol=5e-3, rtol=5e-3)
    assert jnp.allclose(h_n[0], outputs[:, -1, :])   # h_n recovered from outputs

    print("KERNEL_OK")
</pallas_src>

<mosaic_0001>
module attributes {stable_mosaic.version = 11 : i64} {
  func.func @_lstm_kernel(%arg0: i32, %arg1: i32, %arg2: memref<8x2x512xf32, #tpu.memory_space<vmem>>, %arg3: memref<128x512xbf16, #tpu.memory_space<vmem>>, %arg4: memref<8x2x128xf32, #tpu.memory_space<vmem>>, %arg5: memref<2x128xf32, #tpu.memory_space<vmem>>, %arg6: memref<2x128xf32, #tpu.memory_space<vmem>>, %arg7: memref<2x128xf32, #tpu.memory_space<vmem>>) attributes {dimension_semantics = [#tpu.dimension_semantics<parallel>, #tpu.dimension_semantics<arbitrary>], iteration_bounds = array<i64: 1, 1>, scalar_prefetch = 0 : i64, scratch_operands = 2 : i64, tpu.core_type = #tpu.core_type<tc>, window_params = [{transform_indices = @transform_0, window_bounds = array<i64: 8, 2, 512>}, {pipeline_mode = #tpu.pipeline_mode<synchronous>, transform_indices = @transform_1, window_bounds = array<i64: 128, 512>}, {transform_indices = @transform_2, window_bounds = array<i64: 8, 2, 128>}, {transform_indices = @transform_3, window_bounds = array<i64: 2, 128>}]} {
    %c0_i32 = arith.constant 0 : i32
    %0 = arith.cmpi eq, %arg1, %c0_i32 : i32
    %1 = arith.extui %0 : i1 to i32
    %c0_i32_0 = arith.constant 0 : i32
    %2 = arith.cmpi ne, %1, %c0_i32_0 : i32
    scf.if %2 {
      %cst_90 = arith.constant 0.000000e+00 : f32
      %296 = vector.broadcast %cst_90 : f32 to vector<2x128xf32>
      %c0_91 = arith.constant 0 : index
      %c0_92 = arith.constant 0 : index
      %297 = vector.load %arg6[%c0_91, %c0_92] : memref<2x128xf32, #tpu.memory_space<vmem>>, vector<2x128xf32>
      tpu.vector_store %arg6[%c0_91, %c0_92], %296 {strides = array<i32>} : memref<2x128xf32, #tpu.memory_space<vmem>>, vector<2x128xf32>,
      %cst_93 = arith.constant 0.000000e+00 : f32
      %298 = vector.broadcast %cst_93 : f32 to vector<2x128xf32>
      %c0_94 = arith.constant 0 : index
      %c0_95 = arith.constant 0 : index
      %299 = vector.load %arg7[%c0_94, %c0_95] : memref<2x128xf32, #tpu.memory_space<vmem>>, vector<2x128xf32>
      tpu.vector_store %arg7[%c0_94, %c0_95], %298 {strides = array<i32>} : memref<2x128xf32, #tpu.memory_space<vmem>>, vector<2x128xf32>,
    } else {
    }
    %c0 = arith.constant 0 : index
    %c0_1 = arith.constant 0 : index
    %3 = vector.load %arg6[%c0, %c0_1] : memref<2x128xf32, #tpu.memory_space<vmem>>, vector<2x128xf32>
    %c0_2 = arith.constant 0 : index
    %c0_3 = arith.constant 0 : index
    %4 = vector.load %arg7[%c0_2, %c0_3] : memref<2x128xf32, #tpu.memory_space<vmem>>, vector<2x128xf32>
    %c0_i32_4 = arith.constant 0 : i32
    %5 = arith.index_cast %c0_i32_4 : i32 to index
    %c0_5 = arith.constant 0 : index
    %c0_6 = arith.constant 0 : index
    %6 = vector.load %arg2[%5, %c0_5, %c0_6] : memref<8x2x512xf32, #tpu.memory_space<vmem>>, vector<1x2x512xf32>
    %7 = vector.shape_cast %6 : vector<1x2x512xf32> to vector<2x512xf32>
    %8 = arith.truncf %3 : vector<2x128xf32> to vector<2x128xbf16>
    %c0_7 = arith.constant 0 : index
    %c0_8 = arith.constant 0 : index
    %9 = vector.load %arg3[%c0_7, %c0_8] : memref<128x512xbf16, #tpu.memory_space<vmem>>, vector<128x512xbf16>
    %cst = arith.constant dense<0.000000e+00> : vector<2x512xf32>
    %10 = tpu.matmul %8, %9, %cst {dimension_numbers = #tpu.dot_dimension_numbers<[1], [0], [0], [1], [0, 0, 1, 1], [], []>} : vector<2x128xbf16>, vector<128x512xbf16>, vector<2x512xf32> -> vector<2x512xf32>
    %11 = arith.addf %7, %10 : vector<2x512xf32>
    %12 = vector.extract_strided_slice %11 {offsets = [0, 0], sizes = [2, 128], strides = [1, 1]} : vector<2x512xf32> to vector<2x128xf32>
    %13 = arith.negf %12 : vector<2x128xf32>
    %14 = math.exp %13 : vector<2x128xf32>
    %cst_9 = arith.constant 1.000000e+00 : f32
    %15 = vector.broadcast %cst_9 : f32 to vector<2x128xf32>
    %16 = arith.addf %15, %14 : vector<2x128xf32>
    %17 = arith.divf %15, %16 : vector<2x128xf32>
    %18 = vector.extract_strided_slice %11 {offsets = [0, 128], sizes = [2, 128], strides = [1, 1]} : vector<2x512xf32> to vector<2x128xf32>
    %19 = arith.negf %18 : vector<2x128xf32>
    %20 = math.exp %19 : vector<2x128xf32>
    %cst_10 = arith.constant 1.000000e+00 : f32
    %21 = vector.broadcast %cst_10 : f32 to vector<2x128xf32>
    %22 = arith.addf %21, %20 : vector<2x128xf32>
    %23 = arith.divf %21, %22 : vector<2x128xf32>
    %24 = vector.extract_strided_slice %11 {offsets = [0, 256], sizes = [2, 128], strides = [1, 1]} : vector<2x512xf32> to vector<2x128xf32>
    %25 = math.tanh %24 : vector<2x128xf32>
    %26 = vector.extract_strided_slice %11 {offsets = [0, 384], sizes = [2, 128], strides = [1, 1]} : vector<2x512xf32> to vector<2x128xf32>
    %27 = arith.negf %26 : vector<2x128xf32>
    %28 = math.exp %27 : vector<2x128xf32>
    %cst_11 = arith.constant 1.000000e+00 : f32
    %29 = vector.broadcast %cst_11 : f32 to vector<2x128xf32>
    %30 = arith.addf %29, %28 : vector<2x128xf32>
    %31 = arith.divf %29, %30 : vector<2x128xf32>
    %32 = arith.mulf %23, %4 : vector<2x128xf32>
    %33 = arith.mulf %17, %25 : vector<2x128xf32>
    %34 = arith.addf %32, %33 : vector<2x128xf32>
    %35 = math.tanh %34 : vector<2x128xf32>
    %36 = arith.mulf %31, %35 : vector<2x128xf32>
    %37 = arith.index_cast %c0_i32_4 : i32 to index
    %c0_12 = arith.constant 0 : index
    %c0_13 = arith.constant 0 : index
    %38 = vector.load %arg4[%37, %c0_12, %c0_13] : memref<8x2x128xf32, #tpu.memory_space<vmem>>, vector<1x2x128xf32>
    %39 = vector.shape_cast %38 : vector<1x2x128xf32> to vector<2x128xf32>
    %40 = vector.shape_cast %36 : vector<2x128xf32> to vector<1x2x128xf32>
    tpu.vector_store %arg4[%37, %c0_12, %c0_13], %40 {strides = array<i32>} : memref<8x2x128xf32, #tpu.memory_space<vmem>>, vector<1x2x128xf32>,
    %c1_i32 = arith.constant 1 : i32
    %41 = arith.index_cast %c1_i32 : i32 to index
    %c0_14 = arith.constant 0 : index
    %c0_15 = arith.constant 0 : index
    %42 = vector.load %arg2[%41, %c0_14, %c0_15] : memref<8x2x512xf32, #tpu.memory_space<vmem>>, vector<1x2x512xf32>
    %43 = vector.shape_cast %42 : vector<1x2x512xf32> to vector<2x512xf32>
    %44 = arith.truncf %36 : vector<2x128xf32> to vector<2x128xbf16>
    %c0_16 = arith.constant 0 : index
    %c0_17 = arith.constant 0 : index
    %45 = vector.load %arg3[%c0_16, %c0_17] : memref<128x512xbf16, #tpu.memory_space<vmem>>, vector<128x512xbf16>
    %cst_18 = arith.constant dense<0.000000e+00> : vector<2x512xf32>
    %46 = tpu.matmul %44, %45, %cst_18 {dimension_numbers = #tpu.dot_dimension_numbers<[1], [0], [0], [1], [0, 0, 1, 1], [], []>} : vector<2x128xbf16>, vector<128x512xbf16>, vector<2x512xf32> -> vector<2x512xf32>
    %47 = arith.addf %43, %46 : vector<2x512xf32>
    %48 = vector.extract_strided_slice %47 {offsets = [0, 0], sizes = [2, 128], strides = [1, 1]} : vector<2x512xf32> to vector<2x128xf32>
    %49 = arith.negf %48 : vector<2x128xf32>
    %50 = math.exp %49 : vector<2x128xf32>
    %cst_19 = arith.constant 1.000000e+00 : f32
    %51 = vector.broadcast %cst_19 : f32 to vector<2x128xf32>
    %52 = arith.addf %51, %50 : vector<2x128xf32>
    %53 = arith.divf %51, %52 : vector<2x128xf32>
    %54 = vector.extract_strided_slice %47 {offsets = [0, 128], sizes = [2, 128], strides = [1, 1]} : vector<2x512xf32> to vector<2x128xf32>
    %55 = arith.negf %54 : vector<2x128xf32>
    %56 = math.exp %55 : vector<2x128xf32>
    %cst_20 = arith.constant 1.000000e+00 : f32
    %57 = vector.broadcast %cst_20 : f32 to vector<2x128xf32>
    %58 = arith.addf %57, %56 : vector<2x128xf32>
    %59 = arith.divf %57, %58 : vector<2x128xf32>
    %60 = vector.extract_strided_slice %47 {offsets = [0, 256], sizes = [2, 128], strides = [1, 1]} : vector<2x512xf32> to vector<2x128xf32>
    %61 = math.tanh %60 : vector<2x128xf32>
    %62 = vector.extract_strided_slice %47 {offsets = [0, 384], sizes = [2, 128], strides = [1, 1]} : vector<2x512xf32> to vector<2x128xf32>
    %63 = arith.negf %62 : vector<2x128xf32>
    %64 = math.exp %63 : vector<2x128xf32>
    %cst_21 = arith.constant 1.000000e+00 : f32
    %65 = vector.broadcast %cst_21 : f32 to vector<2x128xf32>
    %66 = arith.addf %65, %64 : vector<2x128xf32>
    %67 = arith.divf %65, %66 : vector<2x128xf32>
    %68 = arith.mulf %59, %34 : vector<2x128xf32>
    %69 = arith.mulf %53, %61 : vector<2x128xf32>
    %70 = arith.addf %68, %69 : vector<2x128xf32>
    %71 = math.tanh %70 : vector<2x128xf32>
    %72 = arith.mulf %67, %71 : vector<2x128xf32>
    %73 = arith.index_cast %c1_i32 : i32 to index
    %c0_22 = arith.constant 0 : index
    %c0_23 = arith.constant 0 : index
    %74 = vector.load %arg4[%73, %c0_22, %c0_23] : memref<8x2x128xf32, #tpu.memory_space<vmem>>, vector<1x2x128xf32>
    %75 = vector.shape_cast %74 : vector<1x2x128xf32> to vector<2x128xf32>
    %76 = vector.shape_cast %72 : vector<2x128xf32> to vector<1x2x128xf32>
    tpu.vector_store %arg4[%73, %c0_22, %c0_23], %76 {strides = array<i32>} : memref<8x2x128xf32, #tpu.memory_space<vmem>>, vector<1x2x128xf32>,
    %c2_i32 = arith.constant 2 : i32
    %77 = arith.index_cast %c2_i32 : i32 to index
    %c0_24 = arith.constant 0 : index
    %c0_25 = arith.constant 0 : index
    %78 = vector.load %arg2[%77, %c0_24, %c0_25] : memref<8x2x512xf32, #tpu.memory_space<vmem>>, vector<1x2x512xf32>
    %79 = vector.shape_cast %78 : vector<1x2x512xf32> to vector<2x512xf32>
    %80 = arith.truncf %72 : vector<2x128xf32> to vector<2x128xbf16>
    %c0_26 = arith.constant 0 : index
    %c0_27 = arith.constant 0 : index
    %81 = vector.load %arg3[%c0_26, %c0_27] : memref<128x512xbf16, #tpu.memory_space<vmem>>, vector<128x512xbf16>
    %cst_28 = arith.constant dense<0.000000e+00> : vector<2x512xf32>
    %82 = tpu.matmul %80, %81, %cst_28 {dimension_numbers = #tpu.dot_dimension_numbers<[1], [0], [0], [1], [0, 0, 1, 1], [], []>} : vector<2x128xbf16>, vector<128x512xbf16>, vector<2x512xf32> -> vector<2x512xf32>
    %83 = arith.addf %79, %82 : vector<2x512xf32>
    %84 = vector.extract_strided_slice %83 {offsets = [0, 0], sizes = [2, 128], strides = [1, 1]} : vector<2x512xf32> to vector<2x128xf32>
    %85 = arith.negf %84 : vector<2x128xf32>
    %86 = math.exp %85 : vector<2x128xf32>
    %cst_29 = arith.constant 1.000000e+00 : f32
    %87 = vector.broadcast %cst_29 : f32 to vector<2x128xf32>
    %88 = arith.addf %87, %86 : vector<2x128xf32>
    %89 = arith.divf %87, %88 : vector<2x128xf32>
    %90 = vector.extract_strided_slice %83 {offsets = [0, 128], sizes = [2, 128], strides = [1, 1]} : vector<2x512xf32> to vector<2x128xf32>
    %91 = arith.negf %90 : vector<2x128xf32>
    %92 = math.exp %91 : vector<2x128xf32>
    %cst_30 = arith.constant 1.000000e+00 : f32
    %93 = vector.broadcast %cst_30 : f32 to vector<2x128xf32>
    %94 = arith.addf %93, %92 : vector<2x128xf32>
    %95 = arith.divf %93, %94 : vector<2x128xf32>
    %96 = vector.extract_strided_slice %83 {offsets = [0, 256], sizes = [2, 128], strides = [1, 1]} : vector<2x512xf32> to vector<2x128xf32>
    %97 = math.tanh %96 : vector<2x128xf32>
    %98 = vector.extract_strided_slice %83 {offsets = [0, 384], sizes = [2, 128], strides = [1, 1]} : vector<2x512xf32> to vector<2x128xf32>
    %99 = arith.negf %98 : vector<2x128xf32>
    %100 = math.exp %99 : vector<2x128xf32>
    %cst_31 = arith.constant 1.000000e+00 : f32
    %101 = vector.broadcast %cst_31 : f32 to vector<2x128xf32>
    %102 = arith.addf %101, %100 : vector<2x128xf32>
    %103 = arith.divf %101, %102 : vector<2x128xf32>
    %104 = arith.mulf %95, %70 : vector<2x128xf32>
    %105 = arith.mulf %89, %97 : vector<2x128xf32>
    %106 = arith.addf %104, %105 : vector<2x128xf32>
    %107 = math.tanh %106 : vector<2x128xf32>
    %108 = arith.mulf %103, %107 : vector<2x128xf32>
    %109 = arith.index_cast %c2_i32 : i32 to index
    %c0_32 = arith.constant 0 : index
    %c0_33 = arith.constant 0 : index
    %110 = vector.load %arg4[%109, %c0_32, %c0_33] : memref<8x2x128xf32, #tpu.memory_space<vmem>>, vector<1x2x128xf32>
    %111 = vector.shape_cast %110 : vector<1x2x128xf32> to vector<2x128xf32>
    %112 = vector.shape_cast %108 : vector<2x128xf32> to vector<1x2x128xf32>
    tpu.vector_store %arg4[%109, %c0_32, %c0_33], %112 {strides = array<i32>} : memref<8x2x128xf32, #tpu.memory_space<vmem>>, vector<1x2x128xf32>,
    %c3_i32 = arith.constant 3 : i32
    %113 = arith.index_cast %c3_i32 : i32 to index
    %c0_34 = arith.constant 0 : index
    %c0_35 = arith.constant 0 : index
    %114 = vector.load %arg2[%113, %c0_34, %c0_35] : memref<8x2x512xf32, #tpu.memory_space<vmem>>, vector<1x2x512xf32>
    %115 = vector.shape_cast %114 : vector<1x2x512xf32> to vector<2x512xf32>
    %116 = arith.truncf %108 : vector<2x128xf32> to vector<2x128xbf16>
    %c0_36 = arith.constant 0 : index
    %c0_37 = arith.constant 0 : index
    %117 = vector.load %arg3[%c0_36, %c0_37] : memref<128x512xbf16, #tpu.memory_space<vmem>>, vector<128x512xbf16>
    %cst_38 = arith.constant dense<0.000000e+00> : vector<2x512xf32>
    %118 = tpu.matmul %116, %117, %cst_38 {dimension_numbers = #tpu.dot_dimension_numbers<[1], [0], [0], [1], [0, 0, 1, 1], [], []>} : vector<2x128xbf16>, vector<128x512xbf16>, vector<2x512xf32> -> vector<2x512xf32>
    %119 = arith.addf %115, %118 : vector<2x512xf32>
    %120 = vector.extract_strided_slice %119 {offsets = [0, 0], sizes = [2, 128], strides = [1, 1]} : vector<2x512xf32> to vector<2x128xf32>
    %121 = arith.negf %120 : vector<2x128xf32>
    %122 = math.exp %121 : vector<2x128xf32>
    %cst_39 = arith.constant 1.000000e+00 : f32
    %123 = vector.broadcast %cst_39 : f32 to vector<2x128xf32>
    %124 = arith.addf %123, %122 : vector<2x128xf32>
    %125 = arith.divf %123, %124 : vector<2x128xf32>
    %126 = vector.extract_strided_slice %119 {offsets = [0, 128], sizes = [2, 128], strides = [1, 1]} : vector<2x512xf32> to vector<2x128xf32>
    %127 = arith.negf %126 : vector<2x128xf32>
    %128 = math.exp %127 : vector<2x128xf32>
    %cst_40 = arith.constant 1.000000e+00 : f32
    %129 = vector.broadcast %cst_40 : f32 to vector<2x128xf32>
    %130 = arith.addf %129, %128 : vector<2x128xf32>
    %131 = arith.divf %129, %130 : vector<2x128xf32>
    %132 = vector.extract_strided_slice %119 {offsets = [0, 256], sizes = [2, 128], strides = [1, 1]} : vector<2x512xf32> to vector<2x128xf32>
    %133 = math.tanh %132 : vector<2x128xf32>
    %134 = vector.extract_strided_slice %119 {offsets = [0, 384], sizes = [2, 128], strides = [1, 1]} : vector<2x512xf32> to vector<2x128xf32>
    %135 = arith.negf %134 : vector<2x128xf32>
    %136 = math.exp %135 : vector<2x128xf32>
    %cst_41 = arith.constant 1.000000e+00 : f32
    %137 = vector.broadcast %cst_41 : f32 to vector<2x128xf32>
    %138 = arith.addf %137, %136 : vector<2x128xf32>
    %139 = arith.divf %137, %138 : vector<2x128xf32>
    %140 = arith.mulf %131, %106 : vector<2x128xf32>
    %141 = arith.mulf %125, %133 : vector<2x128xf32>
    %142 = arith.addf %140, %141 : vector<2x128xf32>
    %143 = math.tanh %142 : vector<2x128xf32>
    %144 = arith.mulf %139, %143 : vector<2x128xf32>
    %145 = arith.index_cast %c3_i32 : i32 to index
    %c0_42 = arith.constant 0 : index
    %c0_43 = arith.constant 0 : index
    %146 = vector.load %arg4[%145, %c0_42, %c0_43] : memref<8x2x128xf32, #tpu.memory_space<vmem>>, vector<1x2x128xf32>
    %147 = vector.shape_cast %146 : vector<1x2x128xf32> to vector<2x128xf32>
    %148 = vector.shape_cast %144 : vector<2x128xf32> to vector<1x2x128xf32>
    tpu.vector_store %arg4[%145, %c0_42, %c0_43], %148 {strides = array<i32>} : memref<8x2x128xf32, #tpu.memory_space<vmem>>, vector<1x2x128xf32>,
    %c4_i32 = arith.constant 4 : i32
    %149 = arith.index_cast %c4_i32 : i32 to index
    %c0_44 = arith.constant 0 : index
    %c0_45 = arith.constant 0 : index
    %150 = vector.load %arg2[%149, %c0_44, %c0_45] : memref<8x2x512xf32, #tpu.memory_space<vmem>>, vector<1x2x512xf32>
    %151 = vector.shape_cast %150 : vector<1x2x512xf32> to vector<2x512xf32>
    %152 = arith.truncf %144 : vector<2x128xf32> to vector<2x128xbf16>
    %c0_46 = arith.constant 0 : index
    %c0_47 = arith.constant 0 : index
    %153 = vector.load %arg3[%c0_46, %c0_47] : memref<128x512xbf16, #tpu.memory_space<vmem>>, vector<128x512xbf16>
    %cst_48 = arith.constant dense<0.000000e+00> : vector<2x512xf32>
    %154 = tpu.matmul %152, %153, %cst_48 {dimension_numbers = #tpu.dot_dimension_numbers<[1], [0], [0], [1], [0, 0, 1, 1], [], []>} : vector<2x128xbf16>, vector<128x512xbf16>, vector<2x512xf32> -> vector<2x512xf32>
    %155 = arith.addf %151, %154 : vector<2x512xf32>
    %156 = vector.extract_strided_slice %155 {offsets = [0, 0], sizes = [2, 128], strides = [1, 1]} : vector<2x512xf32> to vector<2x128xf32>
    %157 = arith.negf %156 : vector<2x128xf32>
    %158 = math.exp %157 : vector<2x128xf32>
    %cst_49 = arith.constant 1.000000e+00 : f32
    %159 = vector.broadcast %cst_49 : f32 to vector<2x128xf32>
    %160 = arith.addf %159, %158 : vector<2x128xf32>
    %161 = arith.divf %159, %160 : vector<2x128xf32>
    %162 = vector.extract_strided_slice %155 {offsets = [0, 128], sizes = [2, 128], strides = [1, 1]} : vector<2x512xf32> to vector<2x128xf32>
    %163 = arith.negf %162 : vector<2x128xf32>
    %164 = math.exp %163 : vector<2x128xf32>
    %cst_50 = arith.constant 1.000000e+00 : f32
    %165 = vector.broadcast %cst_50 : f32 to vector<2x128xf32>
    %166 = arith.addf %165, %164 : vector<2x128xf32>
    %167 = arith.divf %165, %166 : vector<2x128xf32>
    %168 = vector.extract_strided_slice %155 {offsets = [0, 256], sizes = [2, 128], strides = [1, 1]} : vector<2x512xf32> to vector<2x128xf32>
    %169 = math.tanh %168 : vector<2x128xf32>
    %170 = vector.extract_strided_slice %155 {offsets = [0, 384], sizes = [2, 128], strides = [1, 1]} : vector<2x512xf32> to vector<2x128xf32>
    %171 = arith.negf %170 : vector<2x128xf32>
    %172 = math.exp %171 : vector<2x128xf32>
    %cst_51 = arith.constant 1.000000e+00 : f32
    %173 = vector.broadcast %cst_51 : f32 to vector<2x128xf32>
    %174 = arith.addf %173, %172 : vector<2x128xf32>
    %175 = arith.divf %173, %174 : vector<2x128xf32>
    %176 = arith.mulf %167, %142 : vector<2x128xf32>
    %177 = arith.mulf %161, %169 : vector<2x128xf32>
    %178 = arith.addf %176, %177 : vector<2x128xf32>
    %179 = math.tanh %178 : vector<2x128xf32>
    %180 = arith.mulf %175, %179 : vector<2x128xf32>
    %181 = arith.index_cast %c4_i32 : i32 to index
    %c0_52 = arith.constant 0 : index
    %c0_53 = arith.constant 0 : index
    %182 = vector.load %arg4[%181, %c0_52, %c0_53] : memref<8x2x128xf32, #tpu.memory_space<vmem>>, vector<1x2x128xf32>
    %183 = vector.shape_cast %182 : vector<1x2x128xf32> to vector<2x128xf32>
    %184 = vector.shape_cast %180 : vector<2x128xf32> to vector<1x2x128xf32>
    tpu.vector_store %arg4[%181, %c0_52, %c0_53], %184 {strides = array<i32>} : memref<8x2x128xf32, #tpu.memory_space<vmem>>, vector<1x2x128xf32>,
    %c5_i32 = arith.constant 5 : i32
    %185 = arith.index_cast %c5_i32 : i32 to index
    %c0_54 = arith.constant 0 : index
    %c0_55 = arith.constant 0 : index
    %186 = vector.load %arg2[%185, %c0_54, %c0_55] : memref<8x2x512xf32, #tpu.memory_space<vmem>>, vector<1x2x512xf32>
    %187 = vector.shape_cast %186 : vector<1x2x512xf32> to vector<2x512xf32>
    %188 = arith.truncf %180 : vector<2x128xf32> to vector<2x128xbf16>
    %c0_56 = arith.constant 0 : index
    %c0_57 = arith.constant 0 : index
    %189 = vector.load %arg3[%c0_56, %c0_57] : memref<128x512xbf16, #tpu.memory_space<vmem>>, vector<128x512xbf16>
    %cst_58 = arith.constant dense<0.000000e+00> : vector<2x512xf32>
    %190 = tpu.matmul %188, %189, %cst_58 {dimension_numbers = #tpu.dot_dimension_numbers<[1], [0], [0], [1], [0, 0, 1, 1], [], []>} : vector<2x128xbf16>, vector<128x512xbf16>, vector<2x512xf32> -> vector<2x512xf32>
    %191 = arith.addf %187, %190 : vector<2x512xf32>
    %192 = vector.extract_strided_slice %191 {offsets = [0, 0], sizes = [2, 128], strides = [1, 1]} : vector<2x512xf32> to vector<2x128xf32>
    %193 = arith.negf %192 : vector<2x128xf32>
    %194 = math.exp %193 : vector<2x128xf32>
    %cst_59 = arith.constant 1.000000e+00 : f32
    %195 = vector.broadcast %cst_59 : f32 to vector<2x128xf32>
    %196 = arith.addf %195, %194 : vector<2x128xf32>
    %197 = arith.divf %195, %196 : vector<2x128xf32>
    %198 = vector.extract_strided_slice %191 {offsets = [0, 128], sizes = [2, 128], strides = [1, 1]} : vector<2x512xf32> to vector<2x128xf32>
    %199 = arith.negf %198 : vector<2x128xf32>
    %200 = math.exp %199 : vector<2x128xf32>
    %cst_60 = arith.constant 1.000000e+00 : f32
    %201 = vector.broadcast %cst_60 : f32 to vector<2x128xf32>
    %202 = arith.addf %201, %200 : vector<2x128xf32>
    %203 = arith.divf %201, %202 : vector<2x128xf32>
    %204 = vector.extract_strided_slice %191 {offsets = [0, 256], sizes = [2, 128], strides = [1, 1]} : vector<2x512xf32> to vector<2x128xf32>
    %205 = math.tanh %204 : vector<2x128xf32>
    %206 = vector.extract_strided_slice %191 {offsets = [0, 384], sizes = [2, 128], strides = [1, 1]} : vector<2x512xf32> to vector<2x128xf32>
    %207 = arith.negf %206 : vector<2x128xf32>
    %208 = math.exp %207 : vector<2x128xf32>
    %cst_61 = arith.constant 1.000000e+00 : f32
    %209 = vector.broadcast %cst_61 : f32 to vector<2x128xf32>
    %210 = arith.addf %209, %208 : vector<2x128xf32>
    %211 = arith.divf %209, %210 : vector<2x128xf32>
    %212 = arith.mulf %203, %178 : vector<2x128xf32>
    %213 = arith.mulf %197, %205 : vector<2x128xf32>
    %214 = arith.addf %212, %213 : vector<2x128xf32>
    %215 = math.tanh %214 : vector<2x128xf32>
    %216 = arith.mulf %211, %215 : vector<2x128xf32>
    %217 = arith.index_cast %c5_i32 : i32 to index
    %c0_62 = arith.constant 0 : index
    %c0_63 = arith.constant 0 : index
    %218 = vector.load %arg4[%217, %c0_62, %c0_63] : memref<8x2x128xf32, #tpu.memory_space<vmem>>, vector<1x2x128xf32>
    %219 = vector.shape_cast %218 : vector<1x2x128xf32> to vector<2x128xf32>
    %220 = vector.shape_cast %216 : vector<2x128xf32> to vector<1x2x128xf32>
    tpu.vector_store %arg4[%217, %c0_62, %c0_63], %220 {strides = array<i32>} : memref<8x2x128xf32, #tpu.memory_space<vmem>>, vector<1x2x128xf32>,
    %c6_i32 = arith.constant 6 : i32
    %221 = arith.index_cast %c6_i32 : i32 to index
    %c0_64 = arith.constant 0 : index
    %c0_65 = arith.constant 0 : index
    %222 = vector.load %arg2[%221, %c0_64, %c0_65] : memref<8x2x512xf32, #tpu.memory_space<vmem>>, vector<1x2x512xf32>
    %223 = vector.shape_cast %222 : vector<1x2x512xf32> to vector<2x512xf32>
    %224 = arith.truncf %216 : vector<2x128xf32> to vector<2x128xbf16>
    %c0_66 = arith.constant 0 : index
    %c0_67 = arith.constant 0 : index
    %225 = vector.load %arg3[%c0_66, %c0_67] : memref<128x512xbf16, #tpu.memory_space<vmem>>, vector<128x512xbf16>
    %cst_68 = arith.constant dense<0.000000e+00> : vector<2x512xf32>
    %226 = tpu.matmul %224, %225, %cst_68 {dimension_numbers = #tpu.dot_dimension_numbers<[1], [0], [0], [1], [0, 0, 1, 1], [], []>} : vector<2x128xbf16>, vector<128x512xbf16>, vector<2x512xf32> -> vector<2x512xf32>
    %227 = arith.addf %223, %226 : vector<2x512xf32>
    %228 = vector.extract_strided_slice %227 {offsets = [0, 0], sizes = [2, 128], strides = [1, 1]} : vector<2x512xf32> to vector<2x128xf32>
    %229 = arith.negf %228 : vector<2x128xf32>
    %230 = math.exp %229 : vector<2x128xf32>
    %cst_69 = arith.constant 1.000000e+00 : f32
    %231 = vector.broadcast %cst_69 : f32 to vector<2x128xf32>
    %232 = arith.addf %231, %230 : vector<2x128xf32>
    %233 = arith.divf %231, %232 : vector<2x128xf32>
    %234 = vector.extract_strided_slice %227 {offsets = [0, 128], sizes = [2, 128], strides = [1, 1]} : vector<2x512xf32> to vector<2x128xf32>
    %235 = arith.negf %234 : vector<2x128xf32>
    %236 = math.exp %235 : vector<2x128xf32>
    %cst_70 = arith.constant 1.000000e+00 : f32
    %237 = vector.broadcast %cst_70 : f32 to vector<2x128xf32>
    %238 = arith.addf %237, %236 : vector<2x128xf32>
    %239 = arith.divf %237, %238 : vector<2x128xf32>
    %240 = vector.extract_strided_slice %227 {offsets = [0, 256], sizes = [2, 128], strides = [1, 1]} : vector<2x512xf32> to vector<2x128xf32>
    %241 = math.tanh %240 : vector<2x128xf32>
    %242 = vector.extract_strided_slice %227 {offsets = [0, 384], sizes = [2, 128], strides = [1, 1]} : vector<2x512xf32> to vector<2x128xf32>
    %243 = arith.negf %242 : vector<2x128xf32>
    %244 = math.exp %243 : vector<2x128xf32>
    %cst_71 = arith.constant 1.000000e+00 : f32
    %245 = vector.broadcast %cst_71 : f32 to vector<2x128xf32>
    %246 = arith.addf %245, %244 : vector<2x128xf32>
    %247 = arith.divf %245, %246 : vector<2x128xf32>
    %248 = arith.mulf %239, %214 : vector<2x128xf32>
    %249 = arith.mulf %233, %241 : vector<2x128xf32>
    %250 = arith.addf %248, %249 : vector<2x128xf32>
    %251 = math.tanh %250 : vector<2x128xf32>
    %252 = arith.mulf %247, %251 : vector<2x128xf32>
    %253 = arith.index_cast %c6_i32 : i32 to index
    %c0_72 = arith.constant 0 : index
    %c0_73 = arith.constant 0 : index
    %254 = vector.load %arg4[%253, %c0_72, %c0_73] : memref<8x2x128xf32, #tpu.memory_space<vmem>>, vector<1x2x128xf32>
    %255 = vector.shape_cast %254 : vector<1x2x128xf32> to vector<2x128xf32>
    %256 = vector.shape_cast %252 : vector<2x128xf32> to vector<1x2x128xf32>
    tpu.vector_store %arg4[%253, %c0_72, %c0_73], %256 {strides = array<i32>} : memref<8x2x128xf32, #tpu.memory_space<vmem>>, vector<1x2x128xf32>,
    %c7_i32 = arith.constant 7 : i32
    %257 = arith.index_cast %c7_i32 : i32 to index
    %c0_74 = arith.constant 0 : index
    %c0_75 = arith.constant 0 : index
    %258 = vector.load %arg2[%257, %c0_74, %c0_75] : memref<8x2x512xf32, #tpu.memory_space<vmem>>, vector<1x2x512xf32>
    %259 = vector.shape_cast %258 : vector<1x2x512xf32> to vector<2x512xf32>
    %260 = arith.truncf %252 : vector<2x128xf32> to vector<2x128xbf16>
    %c0_76 = arith.constant 0 : index
    %c0_77 = arith.constant 0 : index
    %261 = vector.load %arg3[%c0_76, %c0_77] : memref<128x512xbf16, #tpu.memory_space<vmem>>, vector<128x512xbf16>
    %cst_78 = arith.constant dense<0.000000e+00> : vector<2x512xf32>
    %262 = tpu.matmul %260, %261, %cst_78 {dimension_numbers = #tpu.dot_dimension_numbers<[1], [0], [0], [1], [0, 0, 1, 1], [], []>} : vector<2x128xbf16>, vector<128x512xbf16>, vector<2x512xf32> -> vector<2x512xf32>
    %263 = arith.addf %259, %262 : vector<2x512xf32>
    %264 = vector.extract_strided_slice %263 {offsets = [0, 0], sizes = [2, 128], strides = [1, 1]} : vector<2x512xf32> to vector<2x128xf32>
    %265 = arith.negf %264 : vector<2x128xf32>
    %266 = math.exp %265 : vector<2x128xf32>
    %cst_79 = arith.constant 1.000000e+00 : f32
    %267 = vector.broadcast %cst_79 : f32 to vector<2x128xf32>
    %268 = arith.addf %267, %266 : vector<2x128xf32>
    %269 = arith.divf %267, %268 : vector<2x128xf32>
    %270 = vector.extract_strided_slice %263 {offsets = [0, 128], sizes = [2, 128], strides = [1, 1]} : vector<2x512xf32> to vector<2x128xf32>
    %271 = arith.negf %270 : vector<2x128xf32>
    %272 = math.exp %271 : vector<2x128xf32>
    %cst_80 = arith.constant 1.000000e+00 : f32
    %273 = vector.broadcast %cst_80 : f32 to vector<2x128xf32>
    %274 = arith.addf %273, %272 : vector<2x128xf32>
    %275 = arith.divf %273, %274 : vector<2x128xf32>
    %276 = vector.extract_strided_slice %263 {offsets = [0, 256], sizes = [2, 128], strides = [1, 1]} : vector<2x512xf32> to vector<2x128xf32>
    %277 = math.tanh %276 : vector<2x128xf32>
    %278 = vector.extract_strided_slice %263 {offsets = [0, 384], sizes = [2, 128], strides = [1, 1]} : vector<2x512xf32> to vector<2x128xf32>
    %279 = arith.negf %278 : vector<2x128xf32>
    %280 = math.exp %279 : vector<2x128xf32>
    %cst_81 = arith.constant 1.000000e+00 : f32
    %281 = vector.broadcast %cst_81 : f32 to vector<2x128xf32>
    %282 = arith.addf %281, %280 : vector<2x128xf32>
    %283 = arith.divf %281, %282 : vector<2x128xf32>
    %284 = arith.mulf %275, %250 : vector<2x128xf32>
    %285 = arith.mulf %269, %277 : vector<2x128xf32>
    %286 = arith.addf %284, %285 : vector<2x128xf32>
    %287 = math.tanh %286 : vector<2x128xf32>
    %288 = arith.mulf %283, %287 : vector<2x128xf32>
    %289 = arith.index_cast %c7_i32 : i32 to index
    %c0_82 = arith.constant 0 : index
    %c0_83 = arith.constant 0 : index
    %290 = vector.load %arg4[%289, %c0_82, %c0_83] : memref<8x2x128xf32, #tpu.memory_space<vmem>>, vector<1x2x128xf32>
    %291 = vector.shape_cast %290 : vector<1x2x128xf32> to vector<2x128xf32>
    %292 = vector.shape_cast %288 : vector<2x128xf32> to vector<1x2x128xf32>
    tpu.vector_store %arg4[%289, %c0_82, %c0_83], %292 {strides = array<i32>} : memref<8x2x128xf32, #tpu.memory_space<vmem>>, vector<1x2x128xf32>,
    %c8_i32 = arith.constant 8 : i32
    %c0_84 = arith.constant 0 : index
    %c0_85 = arith.constant 0 : index
    %293 = vector.load %arg6[%c0_84, %c0_85] : memref<2x128xf32, #tpu.memory_space<vmem>>, vector<2x128xf32>
    tpu.vector_store %arg6[%c0_84, %c0_85], %288 {strides = array<i32>} : memref<2x128xf32, #tpu.memory_space<vmem>>, vector<2x128xf32>,
    %c0_86 = arith.constant 0 : index
    %c0_87 = arith.constant 0 : index
    %294 = vector.load %arg7[%c0_86, %c0_87] : memref<2x128xf32, #tpu.memory_space<vmem>>, vector<2x128xf32>
    tpu.vector_store %arg7[%c0_86, %c0_87], %286 {strides = array<i32>} : memref<2x128xf32, #tpu.memory_space<vmem>>, vector<2x128xf32>,
    %c0_88 = arith.constant 0 : index
    %c0_89 = arith.constant 0 : index
    %295 = vector.load %arg5[%c0_88, %c0_89] : memref<2x128xf32, #tpu.memory_space<vmem>>, vector<2x128xf32>
    tpu.vector_store %arg5[%c0_88, %c0_89], %286 {strides = array<i32>} : memref<2x128xf32, #tpu.memory_space<vmem>>, vector<2x128xf32>,
    return
  }
  func.func @transform_0(%arg0: i32, %arg1: i32) -> (i32, i32, i32) {
    %c0_i32 = arith.constant 0 : i32
    %c0_i32_0 = arith.constant 0 : i32
    return %arg1, %arg0, %c0_i32 : i32, i32, i32
  }
  func.func @transform_1(%arg0: i32, %arg1: i32) -> (i32, i32) {
    %c0_i32 = arith.constant 0 : i32
    %c0_i32_0 = arith.constant 0 : i32
    %c0_i32_1 = arith.constant 0 : i32
    return %c0_i32, %c0_i32_0 : i32, i32
  }
  func.func @transform_2(%arg0: i32, %arg1: i32) -> (i32, i32, i32) {
    %c0_i32 = arith.constant 0 : i32
    %c0_i32_0 = arith.constant 0 : i32
    return %arg1, %arg0, %c0_i32 : i32, i32, i32
  }
  func.func @transform_3(%arg0: i32, %arg1: i32) -> (i32, i32) {
    %c0_i32 = arith.constant 0 : i32
    %c0_i32_0 = arith.constant 0 : i32
    return %arg0, %c0_i32 : i32, i32
  }
}

</mosaic_0001>

<llo_original>
// kernel: encoder_forward.1
$region0: #{encoder_forward.1}
  #allocation0 [shape = 'u32[]', space=smem, size = 0x4, offset = 0x4, fixed_abs, tag = 'smem constant byte address 0x4 - core index']
  #allocation1 [shape = 'u32[144,128]{1,0:T(1,128)}', space=vmem, size = 0x12000, scoped, tag = 'internal scratch']
  #allocation2 [shape = 'f32[2,128]{1,0:T(2,128)}', space=vmem, size = 0x400, scoped, tag = 'scratch operand']
  #allocation3 [shape = 'f32[2,128]{1,0:T(2,128)}', space=vmem, size = 0x400, scoped, tag = 'scratch operand']
  %s0 = inlined_call_operand.vmem [shape: f32[8,2,512], index: 0, kind: input, shape index: {}]
  %s1 = inlined_call_operand.vmem [shape: bf16[128,512], index: 1, kind: input, shape index: {}]
  %s2 = inlined_call_operand.vmem [shape: f32[8,2,128], index: 2, kind: output, shape index: {0}]
  %s3 = inlined_call_operand.vmem [shape: f32[2,128], index: 3, kind: output, shape index: {1}]
  %4 = xla_tuple %s2, %s3
  %s5 = sld [smem:[#allocation0]]
  $region30: #{encoder_forward.1} parent=0
    _
  %s7 = ssub.s32 1, %s5
  %s8 = scalar_select 0, %s7, %s5
  // Predicated region
  $region2: #{encoder_forward.1} parent=0 // pred_check
    _
  $region3: #{encoder_forward.1} parent=0 // pred_check_branch
    %10 = sbr.rel (0) target = $region5
  $region4: #{encoder_forward.1} parent=0 // pred_region
    _
  $region5: #{encoder_forward.1} parent=0 // pred_fallthru
    _
  // Predicated region
  $region6: #{encoder_forward.1} parent=0 // pred_check
    _
  $region7: #{encoder_forward.1} parent=0 // pred_check_branch
    %12 = sbr.rel (0) target = $region9
  $region8: #{encoder_forward.1} parent=0 // pred_region
    _
  $region9: #{encoder_forward.1} parent=0 // pred_fallthru
    _
  %p14 = scmp.eq.s32.totalorder 0, 0
  // Predicated region
  $region10: #{encoder_forward.1} parent=0 // pred_check
    %p15 = pneg %p14
  $region11: #{encoder_forward.1} parent=0 // pred_check_branch
    %17 = sbr.rel (%p15) target = $region13
  $region12: #{encoder_forward.1} parent=0 // pred_region
    %18 = vst [vmem:[#allocation2] sm:$0x3] 0.0
    %19 = vst [vmem:[#allocation3] sm:$0x3] 0.0
  $region13: #{encoder_forward.1} parent=0 // pred_fallthru
    _
  %v20 = vld [vmem:[#allocation2] sm:$0x3]
  %v21 = vld [vmem:[#allocation3] sm:$0x3]
  %v22 = vld [vmem:[%s0] sm:$0xff]
  %v23 = vpack.c.bf16 %v20, %v20
  %v24 = vld [vmem:[%s1] sm:$0xff]
  %v25 = vld [vmem:[%s1 + $0x8] sm:$0xff]
  %v26 = vld [vmem:[%s1 + $0x10] sm:$0xff]
  %v27 = vld [vmem:[%s1 + $0x18] sm:$0xff]
  %v28 = vld [vmem:[%s1 + $0x20] sm:$0xff]
  %v29 = vld [vmem:[%s1 + $0x28] sm:$0xff]
  %v30 = vld [vmem:[%s1 + $0x30] sm:$0xff]
  %v31 = vld [vmem:[%s1 + $0x38] sm:$0xff]
  %v32 = vld [vmem:[%s1 + $0x40] sm:$0xff]
  %v33 = vld [vmem:[%s1 + $0x48] sm:$0xff]
  %v34 = vld [vmem:[%s1 + $0x50] sm:$0xff]
  %v35 = vld [vmem:[%s1 + $0x58] sm:$0xff]
  %v36 = vld [vmem:[%s1 + $0x60] sm:$0xff]
  %v37 = vld [vmem:[%s1 + $0x68] sm:$0xff]
  %v38 = vld [vmem:[%s1 + $0x70] sm:$0xff]
  %v39 = vld [vmem:[%s1 + $0x78] sm:$0xff]
  %v40 = vld [vmem:[%s1 + $0x80] sm:$0xff]
  %v41 = vld [vmem:[%s1 + $0x88] sm:$0xff]
  %v42 = vld [vmem:[%s1 + $0x90] sm:$0xff]
  %v43 = vld [vmem:[%s1 + $0x98] sm:$0xff]
  %v44 = vld [vmem:[%s1 + $0xa0] sm:$0xff]
  %v45 = vld [vmem:[%s1 + $0xa8] sm:$0xff]
  %v46 = vld [vmem:[%s1 + $0xb0] sm:$0xff]
  %v47 = vld [vmem:[%s1 + $0xb8] sm:$0xff]
  %v48 = vld [vmem:[%s1 + $0xc0] sm:$0xff]
  %v49 = vld [vmem:[%s1 + $0xc8] sm:$0xff]
  %v50 = vld [vmem:[%s1 + $0xd0] sm:$0xff]
  %v51 = vld [vmem:[%s1 + $0xd8] sm:$0xff]
  %v52 = vld [vmem:[%s1 + $0xe0] sm:$0xff]
  %v53 = vld [vmem:[%s1 + $0xe8] sm:$0xff]
  %v54 = vld [vmem:[%s1 + $0xf0] sm:$0xff]
  %v55 = vld [vmem:[%s1 + $0xf8] sm:$0xff]
  %v88 = vunpack.c.l.b16 %v24
  %v89 = vunpack.c.h.b16 %v24
  %v90 = vunpack.c.l.b16 %v25
  %v91 = vunpack.c.h.b16 %v25
  %v92 = vunpack.c.l.b16 %v26
  %v93 = vunpack.c.h.b16 %v26
  %v94 = vunpack.c.l.b16 %v27
  %v95 = vunpack.c.h.b16 %v27
  %v96 = vunpack.c.l.b16 %v28
  %v97 = vunpack.c.h.b16 %v28
  %v98 = vunpack.c.l.b16 %v29
  %v99 = vunpack.c.h.b16 %v29
  %v100 = vunpack.c.l.b16 %v30
  %v101 = vunpack.c.h.b16 %v30
  %v102 = vunpack.c.l.b16 %v31
  %v103 = vunpack.c.h.b16 %v31
  %v104 = vunpack.c.l.b16 %v32
  %v105 = vunpack.c.h.b16 %v32
  %v106 = vunpack.c.l.b16 %v33
  %v107 = vunpack.c.h.b16 %v33
  %v108 = vunpack.c.l.b16 %v34
  %v109 = vunpack.c.h.b16 %v34
  %v110 = vunpack.c.l.b16 %v35
  %v111 = vunpack.c.h.b16 %v35
  %v112 = vunpack.c.l.b16 %v36
  %v113 = vunpack.c.h.b16 %v36
  %v114 = vunpack.c.l.b16 %v37
  %v115 = vunpack.c.h.b16 %v37
  %v116 = vunpack.c.l.b16 %v38
  %v117 = vunpack.c.h.b16 %v38
  %v118 = vunpack.c.l.b16 %v39
  %v119 = vunpack.c.h.b16 %v39
  %v120 = vunpack.c.l.b16 %v40
  %v121 = vunpack.c.h.b16 %v40
  %v122 = vunpack.c.l.b16 %v41
  %v123 = vunpack.c.h.b16 %v41
  %v124 = vunpack.c.l.b16 %v42
  %v125 = vunpack.c.h.b16 %v42
  %v126 = vunpack.c.l.b16 %v43
  %v127 = vunpack.c.h.b16 %v43
  %v128 = vunpack.c.l.b16 %v44
  %v129 = vunpack.c.h.b16 %v44
  %v130 = vunpack.c.l.b16 %v45
  %v131 = vunpack.c.h.b16 %v45
  %v132 = vunpack.c.l.b16 %v46
  %v133 = vunpack.c.h.b16 %v46
  %v134 = vunpack.c.l.b16 %v47
  %v135 = vunpack.c.h.b16 %v47
  %v136 = vunpack.c.l.b16 %v48
  %v137 = vunpack.c.h.b16 %v48
  %v138 = vunpack.c.l.b16 %v49
  %v139 = vunpack.c.h.b16 %v49
  %v140 = vunpack.c.l.b16 %v50
  %v141 = vunpack.c.h.b16 %v50
  %v142 = vunpack.c.l.b16 %v51
  %v143 = vunpack.c.h.b16 %v51
  %v144 = vunpack.c.l.b16 %v52
  %v145 = vunpack.c.h.b16 %v52
  %v146 = vunpack.c.l.b16 %v53
  %v147 = vunpack.c.h.b16 %v53
  %v148 = vunpack.c.l.b16 %v54
  %v149 = vunpack.c.h.b16 %v54
  %v150 = vunpack.c.l.b16 %v55
  %v151 = vunpack.c.h.b16 %v55
  %v152 = vpack.c.b16 %v92, %v88
  %v153 = vpack.c.b16 %v93, %v89
  %v154 = vpack.c.b16 %v94, %v90
  %v155 = vpack.c.b16 %v95, %v91
  %v156 = vpack.c.b16 %v100, %v96
  %v157 = vpack.c.b16 %v101, %v97
  %v158 = vpack.c.b16 %v102, %v98
  %v159 = vpack.c.b16 %v103, %v99
  %v160 = vpack.c.b16 %v108, %v104
  %v161 = vpack.c.b16 %v109, %v105
  %v162 = vpack.c.b16 %v110, %v106
  %v163 = vpack.c.b16 %v111, %v107
  %v164 = vpack.c.b16 %v116, %v112
  %v165 = vpack.c.b16 %v117, %v113
  %v166 = vpack.c.b16 %v118, %v114
  %v167 = vpack.c.b16 %v119, %v115
  %v168 = vpack.c.b16 %v124, %v120
  %v169 = vpack.c.b16 %v125, %v121
  %v170 = vpack.c.b16 %v126, %v122
  %v171 = vpack.c.b16 %v127, %v123
  %v172 = vpack.c.b16 %v132, %v128
  %v173 = vpack.c.b16 %v133, %v129
  %v174 = vpack.c.b16 %v134, %v130
  %v175 = vpack.c.b16 %v135, %v131
  %v176 = vpack.c.b16 %v140, %v136
  %v177 = vpack.c.b16 %v141, %v137
  %v178 = vpack.c.b16 %v142, %v138
  %v179 = vpack.c.b16 %v143, %v139
  %v180 = vpack.c.b16 %v148, %v144
  %v181 = vpack.c.b16 %v149, %v145
  %v182 = vpack.c.b16 %v150, %v146
  %v183 = vpack.c.b16 %v151, %v147
  %216 = vmatprep.subr.bf16.mxu0 %v181
  %217 = vmatpush1.bf16.msra.mxu0 %v180
  %218 = vmatprep.subr.bf16.mxu0 %v177
  %219 = vmatpush1.bf16.msra.mxu0 %v176
  %220 = vmatprep.subr.bf16.mxu0 %v173
  %221 = vmatpush1.bf16.msra.mxu0 %v172
  %222 = vmatprep.subr.bf16.mxu0 %v169
  %223 = vmatpush1.bf16.msra.mxu0 %v168
  %224 = vmatprep.subr.bf16.mxu0 %v165
  %225 = vmatpush1.bf16.msra.mxu0 %v164
  %226 = vmatprep.subr.bf16.mxu0 %v161
  %227 = vmatpush1.bf16.msra.mxu0 %v160
  %228 = vmatprep.subr.bf16.mxu0 %v157
  %229 = vmatpush1.bf16.msra.mxu0 %v156
  %230 = vmatprep.subr.bf16.mxu0 %v153
  %231 = vmatpush1.bf16.msra.mxu0 %v152
  %232 = vmatprep.subr.bf16.mxu0 0
  %233 = vmatpush2.bf16.msra.mxu0 0
  %234 = vmatprep.subr.bf16.mxu0 0
  %235 = vmatpush2.bf16.msra.mxu0 0
  %236 = vmatprep.subr.bf16.mxu0 0
  %237 = vmatpush2.bf16.msra.mxu0 0
  %238 = vmatprep.subr.bf16.mxu0 0
  %239 = vmatpush2.bf16.msra.mxu0 0
  %240 = vmatprep.subr.bf16.mxu0 0
  %241 = vmatpush2.bf16.msra.mxu0 0
  %242 = vmatprep.subr.bf16.mxu0 0
  %243 = vmatpush2.bf16.msra.mxu0 0
  %244 = vmatprep.subr.bf16.mxu0 0
  %245 = vmatpush2.bf16.msra.mxu0 0
  %246 = vmatprep.subr.bf16.mxu0 0
  %247 = vmatpush2.bf16.msra.mxu0 0
  %248 = vmatprep.mubr.bf16.mxu0 0
  %249 = vmatmul.mubr.bf16.gmra.mxu0 %v23
  %v250 = vpop.f32.mrf.mxu0
  %v251 = vadd.f32 0.0, %v250
  %v252 = vpop.f32.mrf.mxu0
  %v253 = vadd.f32 0.0, %v252
  %v254 = vpop.f32.mrf.mxu0
  %v255 = vpop.f32.mrf.mxu0
  %256 = vdwg.mxu0
  %257 = vmatprep.subr.bf16.mxu0 %v183
  %258 = vmatpush1.bf16.msra.mxu0 %v182
  %259 = vmatprep.subr.bf16.mxu0 %v179
  %260 = vmatpush1.bf16.msra.mxu0 %v178
  %261 = vmatprep.subr.bf16.mxu0 %v175
  %262 = vmatpush1.bf16.msra.mxu0 %v174
  %263 = vmatprep.subr.bf16.mxu0 %v171
  %264 = vmatpush1.bf16.msra.mxu0 %v170
  %265 = vmatprep.subr.bf16.mxu0 %v167
  %266 = vmatpush1.bf16.msra.mxu0 %v166
  %267 = vmatprep.subr.bf16.mxu0 %v163
  %268 = vmatpush1.bf16.msra.mxu0 %v162
  %269 = vmatprep.subr.bf16.mxu0 %v159
  %270 = vmatpush1.bf16.msra.mxu0 %v158
  %271 = vmatprep.subr.bf16.mxu0 %v155
  %272 = vmatpush1.bf16.msra.mxu0 %v154
  %273 = vmatprep.subr.bf16.mxu0 0
  %274 = vmatpush2.bf16.msra.mxu0 0
  %275 = vmatprep.subr.bf16.mxu0 0
  %276 = vmatpush2.bf16.msra.mxu0 0
  %277 = vmatprep.subr.bf16.mxu0 0
  %278 = vmatpush2.bf16.msra.mxu0 0
  %279 = vmatprep.subr.bf16.mxu0 0
  %280 = vmatpush2.bf16.msra.mxu0 0
  %281 = vmatprep.subr.bf16.mxu0 0
  %282 = vmatpush2.bf16.msra.mxu0 0
  %283 = vmatprep.subr.bf16.mxu0 0
  %284 = vmatpush2.bf16.msra.mxu0 0
  %285 = vmatprep.subr.bf16.mxu0 0
  %286 = vmatpush2.bf16.msra.mxu0 0
  %287 = vmatprep.subr.bf16.mxu0 0
  %288 = vmatpush2.bf16.msra.mxu0 0
  %289 = vmatprep.mubr.bf16.mxu0 0
  %290 = vmatmul.mubr.bf16.gmra.mxu0 %v23
  %v291 = vpop.f32.mrf.mxu0
  %v292 = vadd.f32 0.0, %v291
  %v293 = vpop.f32.mrf.mxu0
  %v294 = vadd.f32 0.0, %v293
  %v295 = vpop.f32.mrf.mxu0
  %v296 = vpop.f32.mrf.mxu0
  %297 = vdwg.mxu0
  %v302 = vcombine.low %v251, %v253
  %v303 = vcombine.low %v292, %v294
  %v305 = vunpack.c.l.s4 1983009808
  %v306 = vunpack.c.0.s8 %v305
  %v307 = vlaneseq
  %v308 = vshrl.u32 %v307, 7
  %v309 = vsub.s32 %v306, %v308
  %v310 = vrot.slane %v302, %v309
  %v312 = vunpack.c.l.s4 1983009808
  %v313 = vunpack.c.0.s8 %v312
  %v314 = vlaneseq
  %v315 = vshrl.u32 %v314, 7
  %v316 = vsub.s32 %v313, %v315
  %v317 = vrot.slane %v303, %v316
  %v318 = vcombine.low %v310, %v317
  %v320 = vadd.f32 %v22, %v318
  %v321 = vxor.u32 %v320, 2147483648
  %v322 = vmul.f32 %v321, 1.442695
  %v323 = vpow.pop %v322
  %v324 = vadd.f32 %v323, 1.0
  %v325 = vrcp.pop %v324
  %v326 = vmul.f32 1.0, %v325
  %v328 = vrot.slane %v320, 2
  %v330 = vxor.u32 %v328, 2147483648
  %v331 = vmul.f32 %v330, 1.442695
  %v332 = vpow.pop %v331
  %v333 = vadd.f32 %v332, 1.0
  %v334 = vrcp.pop %v333
  %v335 = vmul.f32 1.0, %v334
  %v336 = vrot.slane %v320, 4
  %v338 = vtanh.pop %v336
  %v339 = vrot.slane %v320, 6
  %v341 = vxor.u32 %v339, 2147483648
  %v342 = vmul.f32 %v341, 1.442695
  %v343 = vpow.pop %v342
  %v344 = vadd.f32 %v343, 1.0
  %v345 = vrcp.pop %v344
  %v346 = vmul.f32 1.0, %v345
  %v347 = vmul.f32 %v335, %v21
  %v348 = vmul.f32 %v326, %v338
  %v349 = vadd.f32 %v347, %v348
  %v350 = vtanh.pop %v349
  %v351 = vmul.f32 %v346, %v350
  %352 = vst [vmem:[%s2] sm:$0x3] %v351
  %s353 = scalar_lea.vmem %s0, 8
  %v354 = vld [vmem:[%s353] sm:$0xff]
  %v355 = vpack.c.bf16 %v351, %v351
  %v356 = vld [vmem:[%s1] sm:$0xff]
  %v357 = vld [vmem:[%s1 + $0x8] sm:$0xff]
  %v358 = vld [vmem:[%s1 + $0x10] sm:$0xff]
  %v359 = vld [vmem:[%s1 + $0x18] sm:$0xff]
  %v360 = vld [vmem:[%s1 + $0x20] sm:$0xff]
  %v361 = vld [vmem:[%s1 + $0x28] sm:$0xff]
  %v362 = vld [vmem:[%s1 + $0x30] sm:$0xff]
  %v363 = vld [vmem:[%s1 + $0x38] sm:$0xff]
  %v364 = vld [vmem:[%s1 + $0x40] sm:$0xff]
  %v365 = vld [vmem:[%s1 + $0x48] sm:$0xff]
  %v366 = vld [vmem:[%s1 + $0x50] sm:$0xff]
  %v367 = vld [vmem:[%s1 + $0x58] sm:$0xff]
  %v368 = vld [vmem:[%s1 + $0x60] sm:$0xff]
  %v369 = vld [vmem:[%s1 + $0x68] sm:$0xff]
  %v370 = vld [vmem:[%s1 + $0x70] sm:$0xff]
  %v371 = vld [vmem:[%s1 + $0x78] sm:$0xff]
  %v372 = vld [vmem:[%s1 + $0x80] sm:$0xff]
  %v373 = vld [vmem:[%s1 + $0x88] sm:$0xff]
  %v374 = vld [vmem:[%s1 + $0x90] sm:$0xff]
  %v375 = vld [vmem:[%s1 + $0x98] sm:$0xff]
  %v376 = vld [vmem:[%s1 + $0xa0] sm:$0xff]
  %v377 = vld [vmem:[%s1 + $0xa8] sm:$0xff]
  %v378 = vld [vmem:[%s1 + $0xb0] sm:$0xff]
  %v379 = vld [vmem:[%s1 + $0xb8] sm:$0xff]
  %v380 = vld [vmem:[%s1 + $0xc0] sm:$0xff]
  %v381 = vld [vmem:[%s1 + $0xc8] sm:$0xff]
  %v382 = vld [vmem:[%s1 + $0xd0] sm:$0xff]
  %v383 = vld [vmem:[%s1 + $0xd8] sm:$0xff]
  %v384 = vld [vmem:[%s1 + $0xe0] sm:$0xff]
  %v385 = vld [vmem:[%s1 + $0xe8] sm:$0xff]
  %v386 = vld [vmem:[%s1 + $0xf0] sm:$0xff]
  %v387 = vld [vmem:[%s1 + $0xf8] sm:$0xff]
  %v420 = vunpack.c.l.b16 %v356
  %v421 = vunpack.c.h.b16 %v356
  %v422 = vunpack.c.l.b16 %v357
  %v423 = vunpack.c.h.b16 %v357
  %v424 = vunpack.c.l.b16 %v358
  %v425 = vunpack.c.h.b16 %v358
  %v426 = vunpack.c.l.b16 %v359
  %v427 = vunpack.c.h.b16 %v359
  %v428 = vunpack.c.l.b16 %v360
  %v429 = vunpack.c.h.b16 %v360
  %v430 = vunpack.c.l.b16 %v361
  %v431 = vunpack.c.h.b16 %v361
  %v432 = vunpack.c.l.b16 %v362
  %v433 = vunpack.c.h.b16 %v362
  %v434 = vunpack.c.l.b16 %v363
  %v435 = vunpack.c.h.b16 %v363
  %v436 = vunpack.c.l.b16 %v364
  %v437 = vunpack.c.h.b16 %v364
  %v438 = vunpack.c.l.b16 %v365
  %v439 = vunpack.c.h.b16 %v365
  %v440 = vunpack.c.l.b16 %v366
  %v441 = vunpack.c.h.b16 %v366
  %v442 = vunpack.c.l.b16 %v367
  %v443 = vunpack.c.h.b16 %v367
  %v444 = vunpack.c.l.b16 %v368
  %v445 = vunpack.c.h.b16 %v368
  %v446 = vunpack.c.l.b16 %v369
  %v447 = vunpack.c.h.b16 %v369
  %v448 = vunpack.c.l.b16 %v370
  %v449 = vunpack.c.h.b16 %v370
  %v450 = vunpack.c.l.b16 %v371
  %v451 = vunpack.c.h.b16 %v371
  %v452 = vunpack.c.l.b16 %v372
  %v453 = vunpack.c.h.b16 %v372
  %v454 = vunpack.c.l.b16 %v373
  %v455 = vunpack.c.h.b16 %v373
  %v456 = vunpack.c.l.b16 %v374
  %v457 = vunpack.c.h.b16 %v374
  %v458 = vunpack.c.l.b16 %v375
  %v459 = vunpack.c.h.b16 %v375
  %v460 = vunpack.c.l.b16 %v376
  %v461 = vunpack.c.h.b16 %v376
  %v462 = vunpack.c.l.b16 %v377
  %v463 = vunpack.c.h.b16 %v377
  %v464 = vunpack.c.l.b16 %v378
  %v465 = vunpack.c.h.b16 %v378
  %v466 = vunpack.c.l.b16 %v379
  %v467 = vunpack.c.h.b16 %v379
  %v468 = vunpack.c.l.b16 %v380
  %v469 = vunpack.c.h.b16 %v380
  %v470 = vunpack.c.l.b16 %v381
  %v471 = vunpack.c.h.b16 %v381
  %v472 = vunpack.c.l.b16 %v382
  %v473 = vunpack.c.h.b16 %v382
  %v474 = vunpack.c.l.b16 %v383
  %v475 = vunpack.c.h.b16 %v383
  %v476 = vunpack.c.l.b16 %v384
  %v477 = vunpack.c.h.b16 %v384
  %v478 = vunpack.c.l.b16 %v385
  %v479 = vunpack.c.h.b16 %v385
  %v480 = vunpack.c.l.b16 %v386
  %v481 = vunpack.c.h.b16 %v386
  %v482 = vunpack.c.l.b16 %v387
  %v483 = vunpack.c.h.b16 %v387
  %v484 = vpack.c.b16 %v424, %v420
  %v485 = vpack.c.b16 %v425, %v421
  %v486 = vpack.c.b16 %v426, %v422
  %v487 = vpack.c.b16 %v427, %v423
  %v488 = vpack.c.b16 %v432, %v428
  %v489 = vpack.c.b16 %v433, %v429
  %v490 = vpack.c.b16 %v434, %v430
  %v491 = vpack.c.b16 %v435, %v431
  %v492 = vpack.c.b16 %v440, %v436
  %v493 = vpack.c.b16 %v441, %v437
  %v494 = vpack.c.b16 %v442, %v438
  %v495 = vpack.c.b16 %v443, %v439
  %v496 = vpack.c.b16 %v448, %v444
  %v497 = vpack.c.b16 %v449, %v445
  %v498 = vpack.c.b16 %v450, %v446
  %v499 = vpack.c.b16 %v451, %v447
  %v500 = vpack.c.b16 %v456, %v452
  %v501 = vpack.c.b16 %v457, %v453
  %v502 = vpack.c.b16 %v458, %v454
  %v503 = vpack.c.b16 %v459, %v455
  %v504 = vpack.c.b16 %v464, %v460
  %v505 = vpack.c.b16 %v465, %v461
  %v506 = vpack.c.b16 %v466, %v462
  %v507 = vpack.c.b16 %v467, %v463
  %v508 = vpack.c.b16 %v472, %v468
  %v509 = vpack.c.b16 %v473, %v469
  %v510 = vpack.c.b16 %v474, %v470
  %v511 = vpack.c.b16 %v475, %v471
  %v512 = vpack.c.b16 %v480, %v476
  %v513 = vpack.c.b16 %v481, %v477
  %v514 = vpack.c.b16 %v482, %v478
  %v515 = vpack.c.b16 %v483, %v479
  %548 = vmatprep.subr.bf16.mxu0 %v513
  %549 = vmatpush1.bf16.msra.mxu0 %v512
  %550 = vmatprep.subr.bf16.mxu0 %v509
  %551 = vmatpush1.bf16.msra.mxu0 %v508
  %552 = vmatprep.subr.bf16.mxu0 %v505
  %553 = vmatpush1.bf16.msra.mxu0 %v504
  %554 = vmatprep.subr.bf16.mxu0 %v501
  %555 = vmatpush1.bf16.msra.mxu0 %v500
  %556 = vmatprep.subr.bf16.mxu0 %v497
  %557 = vmatpush1.bf16.msra.mxu0 %v496
  %558 = vmatprep.subr.bf16.mxu0 %v493
  %559 = vmatpush1.bf16.msra.mxu0 %v492
  %560 = vmatprep.subr.bf16.mxu0 %v489
  %561 = vmatpush1.bf16.msra.mxu0 %v488
  %562 = vmatprep.subr.bf16.mxu0 %v485
  %563 = vmatpush1.bf16.msra.mxu0 %v484
  %564 = vmatprep.subr.bf16.mxu0 0
  %565 = vmatpush2.bf16.msra.mxu0 0
  %566 = vmatprep.subr.bf16.mxu0 0
  %567 = vmatpush2.bf16.msra.mxu0 0
  %568 = vmatprep.subr.bf16.mxu0 0
  %569 = vmatpush2.bf16.msra.mxu0 0
  %570 = vmatprep.subr.bf16.mxu0 0
  %571 = vmatpush2.bf16.msra.mxu0 0
  %572 = vmatprep.subr.bf16.mxu0 0
  %573 = vmatpush2.bf16.msra.mxu0 0
  %574 = vmatprep.subr.bf16.mxu0 0
  %575 = vmatpush2.bf16.msra.mxu0 0
  %576 = vmatprep.subr.bf16.mxu0 0
  %577 = vmatpush2.bf16.msra.mxu0 0
  %578 = vmatprep.subr.bf16.mxu0 0
  %579 = vmatpush2.bf16.msra.mxu0 0
  %580 = vmatprep.mubr.bf16.mxu0 0
  %581 = vmatmul.mubr.bf16.gmra.mxu0 %v355
  %v582 = vpop.f32.mrf.mxu0
  %v583 = vadd.f32 0.0, %v582
  %v584 = vpop.f32.mrf.mxu0
  %v585 = vadd.f32 0.0, %v584
  %v586 = vpop.f32.mrf.mxu0
  %v587 = vpop.f32.mrf.mxu0
  %588 = vdwg.mxu0
  %589 = vmatprep.subr.bf16.mxu0 %v515
  %590 = vmatpush1.bf16.msra.mxu0 %v514
  %591 = vmatprep.subr.bf16.mxu0 %v511
  %592 = vmatpush1.bf16.msra.mxu0 %v510
  %593 = vmatprep.subr.bf16.mxu0 %v507
  %594 = vmatpush1.bf16.msra.mxu0 %v506
  %595 = vmatprep.subr.bf16.mxu0 %v503
  %596 = vmatpush1.bf16.msra.mxu0 %v502
  %597 = vmatprep.subr.bf16.mxu0 %v499
  %598 = vmatpush1.bf16.msra.mxu0 %v498
  %599 = vmatprep.subr.bf16.mxu0 %v495
  %600 = vmatpush1.bf16.msra.mxu0 %v494
  %601 = vmatprep.subr.bf16.mxu0 %v491
  %602 = vmatpush1.bf16.msra.mxu0 %v490
  %603 = vmatprep.subr.bf16.mxu0 %v487
  %604 = vmatpush1.bf16.msra.mxu0 %v486
  %605 = vmatprep.subr.bf16.mxu0 0
  %606 = vmatpush2.bf16.msra.mxu0 0
  %607 = vmatprep.subr.bf16.mxu0 0
  %608 = vmatpush2.bf16.msra.mxu0 0
  %609 = vmatprep.subr.bf16.mxu0 0
  %610 = vmatpush2.bf16.msra.mxu0 0
  %611 = vmatprep.subr.bf16.mxu0 0
  %612 = vmatpush2.bf16.msra.mxu0 0
  %613 = vmatprep.subr.bf16.mxu0 0
  %614 = vmatpush2.bf16.msra.mxu0 0
  %615 = vmatprep.subr.bf16.mxu0 0
  %616 = vmatpush2.bf16.msra.mxu0 0
  %617 = vmatprep.subr.bf16.mxu0 0
  %618 = vmatpush2.bf16.msra.mxu0 0
  %619 = vmatprep.subr.bf16.mxu0 0
  %620 = vmatpush2.bf16.msra.mxu0 0
  %621 = vmatprep.mubr.bf16.mxu0 0
  %622 = vmatmul.mubr.bf16.gmra.mxu0 %v355
  %v623 = vpop.f32.mrf.mxu0
  %v624 = vadd.f32 0.0, %v623
  %v625 = vpop.f32.mrf.mxu0
  %v626 = vadd.f32 0.0, %v625
  %v627 = vpop.f32.mrf.mxu0
  %v628 = vpop.f32.mrf.mxu0
  %629 = vdwg.mxu0
  %v634 = vcombine.low %v583, %v585
  %v635 = vcombine.low %v624, %v626
  %v637 = vunpack.c.l.s4 1983009808
  %v638 = vunpack.c.0.s8 %v637
  %v639 = vlaneseq
  %v640 = vshrl.u32 %v639, 7
  %v641 = vsub.s32 %v638, %v640
  %v642 = vrot.slane %v634, %v641
  %v644 = vunpack.c.l.s4 1983009808
  %v645 = vunpack.c.0.s8 %v644
  %v646 = vlaneseq
  %v647 = vshrl.u32 %v646, 7
  %v648 = vsub.s32 %v645, %v647
  %v649 = vrot.slane %v635, %v648
  %v650 = vcombine.low %v642, %v649
  %v652 = vadd.f32 %v354, %v650
  %v653 = vxor.u32 %v652, 2147483648
  %v654 = vmul.f32 %v653, 1.442695
  %v655 = vpow.pop %v654
  %v656 = vadd.f32 %v655, 1.0
  %v657 = vrcp.pop %v656
  %v658 = vmul.f32 1.0, %v657
  %v660 = vrot.slane %v652, 2
  %v662 = vxor.u32 %v660, 2147483648
  %v663 = vmul.f32 %v662, 1.442695
  %v664 = vpow.pop %v663
  %v665 = vadd.f32 %v664, 1.0
  %v666 = vrcp.pop %v665
  %v667 = vmul.f32 1.0, %v666
  %v668 = vrot.slane %v652, 4
  %v670 = vtanh.pop %v668
  %v671 = vrot.slane %v652, 6
  %v673 = vxor.u32 %v671, 2147483648
  %v674 = vmul.f32 %v673, 1.442695
  %v675 = vpow.pop %v674
  %v676 = vadd.f32 %v675, 1.0
  %v677 = vrcp.pop %v676
  %v678 = vmul.f32 1.0, %v677
  %v679 = vmul.f32 %v667, %v349
  %v680 = vmul.f32 %v658, %v670
  %v681 = vadd.f32 %v679, %v680
  %v682 = vtanh.pop %v681
  %v683 = vmul.f32 %v678, %v682
  %s684 = scalar_lea.vmem %s2, 2
  %685 = vst [vmem:[%s684] sm:$0x3] %v683
  %s686 = scalar_lea.vmem %s0, 16
  %v687 = vld [vmem:[%s686] sm:$0xff]
  %v688 = vpack.c.bf16 %v683, %v683
  %v689 = vld [vmem:[%s1] sm:$0xff]
  %v690 = vld [vmem:[%s1 + $0x8] sm:$0xff]
  %v691 = vld [vmem:[%s1 + $0x10] sm:$0xff]
  %v692 = vld [vmem:[%s1 + $0x18] sm:$0xff]
  %v693 = vld [vmem:[%s1 + $0x20] sm:$0xff]
  %v694 = vld [vmem:[%s1 + $0x28] sm:$0xff]
  %v695 = vld [vmem:[%s1 + $0x30] sm:$0xff]
  %v696 = vld [vmem:[%s1 + $0x38] sm:$0xff]
  %v697 = vld [vmem:[%s1 + $0x40] sm:$0xff]
  %v698 = vld [vmem:[%s1 + $0x48] sm:$0xff]
  %v699 = vld [vmem:[%s1 + $0x50] sm:$0xff]
  %v700 = vld [vmem:[%s1 + $0x58] sm:$0xff]
  %v701 = vld [vmem:[%s1 + $0x60] sm:$0xff]
  %v702 = vld [vmem:[%s1 + $0x68] sm:$0xff]
  %v703 = vld [vmem:[%s1 + $0x70] sm:$0xff]
  %v704 = vld [vmem:[%s1 + $0x78] sm:$0xff]
  %v705 = vld [vmem:[%s1 + $0x80] sm:$0xff]
  %v706 = vld [vmem:[%s1 + $0x88] sm:$0xff]
  %v707 = vld [vmem:[%s1 + $0x90] sm:$0xff]
  %v708 = vld [vmem:[%s1 + $0x98] sm:$0xff]
  %v709 = vld [vmem:[%s1 + $0xa0] sm:$0xff]
  %v710 = vld [vmem:[%s1 + $0xa8] sm:$0xff]
  %v711 = vld [vmem:[%s1 + $0xb0] sm:$0xff]
  %v712 = vld [vmem:[%s1 + $0xb8] sm:$0xff]
  %v713 = vld [vmem:[%s1 + $0xc0] sm:$0xff]
  %v714 = vld [vmem:[%s1 + $0xc8] sm:$0xff]
  %v715 = vld [vmem:[%s1 + $0xd0] sm:$0xff]
  %v716 = vld [vmem:[%s1 + $0xd8] sm:$0xff]
  %v717 = vld [vmem:[%s1 + $0xe0] sm:$0xff]
  %v718 = vld [vmem:[%s1 + $0xe8] sm:$0xff]
  %v719 = vld [vmem:[%s1 + $0xf0] sm:$0xff]
  %v720 = vld [vmem:[%s1 + $0xf8] sm:$0xff]
  %v753 = vunpack.c.l.b16 %v689
  %v754 = vunpack.c.h.b16 %v689
  %v755 = vunpack.c.l.b16 %v690
  %v756 = vunpack.c.h.b16 %v690
  %v757 = vunpack.c.l.b16 %v691
  %v758 = vunpack.c.h.b16 %v691
  %v759 = vunpack.c.l.b16 %v692
  %v760 = vunpack.c.h.b16 %v692
  %v761 = vunpack.c.l.b16 %v693
  %v762 = vunpack.c.h.b16 %v693
  %v763 = vunpack.c.l.b16 %v694
  %v764 = vunpack.c.h.b16 %v694
  %v765 = vunpack.c.l.b16 %v695
  %v766 = vunpack.c.h.b16 %v695
  %v767 = vunpack.c.l.b16 %v696
  %v768 = vunpack.c.h.b16 %v696
  %v769 = vunpack.c.l.b16 %v697
  %v770 = vunpack.c.h.b16 %v697
  %v771 = vunpack.c.l.b16 %v698
  %v772 = vunpack.c.h.b16 %v698
  %v773 = vunpack.c.l.b16 %v699
  %v774 = vunpack.c.h.b16 %v699
  %v775 = vunpack.c.l.b16 %v700
  %v776 = vunpack.c.h.b16 %v700
  %v777 = vunpack.c.l.b16 %v701
  %v778 = vunpack.c.h.b16 %v701
  %v779 = vunpack.c.l.b16 %v702
  %v780 = vunpack.c.h.b16 %v702
  %v781 = vunpack.c.l.b16 %v703
  %v782 = vunpack.c.h.b16 %v703
  %v783 = vunpack.c.l.b16 %v704
  %v784 = vunpack.c.h.b16 %v704
  %v785 = vunpack.c.l.b16 %v705
  %v786 = vunpack.c.h.b16 %v705
  %v787 = vunpack.c.l.b16 %v706
  %v788 = vunpack.c.h.b16 %v706
  %v789 = vunpack.c.l.b16 %v707
  %v790 = vunpack.c.h.b16 %v707
  %v791 = vunpack.c.l.b16 %v708
  %v792 = vunpack.c.h.b16 %v708
  %v793 = vunpack.c.l.b16 %v709
  %v794 = vunpack.c.h.b16 %v709
  %v795 = vunpack.c.l.b16 %v710
  %v796 = vunpack.c.h.b16 %v710
  %v797 = vunpack.c.l.b16 %v711
  %v798 = vunpack.c.h.b16 %v711
  %v799 = vunpack.c.l.b16 %v712
  %v800 = vunpack.c.h.b16 %v712
  %v801 = vunpack.c.l.b16 %v713
  %v802 = vunpack.c.h.b16 %v713
  %v803 = vunpack.c.l.b16 %v714
  %v804 = vunpack.c.h.b16 %v714
  %v805 = vunpack.c.l.b16 %v715
  %v806 = vunpack.c.h.b16 %v715
  %v807 = vunpack.c.l.b16 %v716
  %v808 = vunpack.c.h.b16 %v716
  %v809 = vunpack.c.l.b16 %v717
  %v810 = vunpack.c.h.b16 %v717
  %v811 = vunpack.c.l.b16 %v718
  %v812 = vunpack.c.h.b16 %v718
  %v813 = vunpack.c.l.b16 %v719
  %v814 = vunpack.c.h.b16 %v719
  %v815 = vunpack.c.l.b16 %v720
  %v816 = vunpack.c.h.b16 %v720
  %v817 = vpack.c.b16 %v757, %v753
  %v818 = vpack.c.b16 %v758, %v754
  %v819 = vpack.c.b16 %v759, %v755
  %v820 = vpack.c.b16 %v760, %v756
  %v821 = vpack.c.b16 %v765, %v761
  %v822 = vpack.c.b16 %v766, %v762
  %v823 = vpack.c.b16 %v767, %v763
  %v824 = vpack.c.b16 %v768, %v764
  %v825 = vpack.c.b16 %v773, %v769
  %v826 = vpack.c.b16 %v774, %v770
  %v827 = vpack.c.b16 %v775, %v771
  %v828 = vpack.c.b16 %v776, %v772
  %v829 = vpack.c.b16 %v781, %v777
  %v830 = vpack.c.b16 %v782, %v778
  %v831 = vpack.c.b16 %v783, %v779
  %v832 = vpack.c.b16 %v784, %v780
  %v833 = vpack.c.b16 %v789, %v785
  %v834 = vpack.c.b16 %v790, %v786
  %v835 = vpack.c.b16 %v791, %v787
  %v836 = vpack.c.b16 %v792, %v788
  %v837 = vpack.c.b16 %v797, %v793
  %v838 = vpack.c.b16 %v798, %v794
  %v839 = vpack.c.b16 %v799, %v795
  %v840 = vpack.c.b16 %v800, %v796
  %v841 = vpack.c.b16 %v805, %v801
  %v842 = vpack.c.b16 %v806, %v802
  %v843 = vpack.c.b16 %v807, %v803
  %v844 = vpack.c.b16 %v808, %v804
  %v845 = vpack.c.b16 %v813, %v809
  %v846 = vpack.c.b16 %v814, %v810
  %v847 = vpack.c.b16 %v815, %v811
  %v848 = vpack.c.b16 %v816, %v812
  %881 = vmatprep.subr.bf16.mxu0 %v846
  %882 = vmatpush1.bf16.msra.mxu0 %v845
  %883 = vmatprep.subr.bf16.mxu0 %v842
  %884 = vmatpush1.bf16.msra.mxu0 %v841
  %885 = vmatprep.subr.bf16.mxu0 %v838
  %886 = vmatpush1.bf16.msra.mxu0 %v837
  %887 = vmatprep.subr.bf16.mxu0 %v834
  %888 = vmatpush1.bf16.msra.mxu0 %v833
  %889 = vmatprep.subr.bf16.mxu0 %v830
  %890 = vmatpush1.bf16.msra.mxu0 %v829
  %891 = vmatprep.subr.bf16.mxu0 %v826
  %892 = vmatpush1.bf16.msra.mxu0 %v825
  %893 = vmatprep.subr.bf16.mxu0 %v822
  %894 = vmatpush1.bf16.msra.mxu0 %v821
  %895 = vmatprep.subr.bf16.mxu0 %v818
  %896 = vmatpush1.bf16.msra.mxu0 %v817
  %897 = vmatprep.subr.bf16.mxu0 0
  %898 = vmatpush2.bf16.msra.mxu0 0
  %899 = vmatprep.subr.bf16.mxu0 0
  %900 = vmatpush2.bf16.msra.mxu0 0
  %901 = vmatprep.subr.bf16.mxu0 0
  %902 = vmatpush2.bf16.msra.mxu0 0
  %903 = vmatprep.subr.bf16.mxu0 0
  %904 = vmatpush2.bf16.msra.mxu0 0
  %905 = vmatprep.subr.bf16.mxu0 0
  %906 = vmatpush2.bf16.msra.mxu0 0
  %907 = vmatprep.subr.bf16.mxu0 0
  %908 = vmatpush2.bf16.msra.mxu0 0
  %909 = vmatprep.subr.bf16.mxu0 0
  %910 = vmatpush2.bf16.msra.mxu0 0
  %911 = vmatprep.subr.bf16.mxu0 0
  %912 = vmatpush2.bf16.msra.mxu0 0
  %913 = vmatprep.mubr.bf16.mxu0 0
  %914 = vmatmul.mubr.bf16.gmra.mxu0 %v688
  %v915 = vpop.f32.mrf.mxu0
  %v916 = vadd.f32 0.0, %v915
  %v917 = vpop.f32.mrf.mxu0
  %v918 = vadd.f32 0.0, %v917
  %v919 = vpop.f32.mrf.mxu0
  %v920 = vpop.f32.mrf.mxu0
  %921 = vdwg.mxu0
  %922 = vmatprep.subr.bf16.mxu0 %v848
  %923 = vmatpush1.bf16.msra.mxu0 %v847
  %924 = vmatprep.subr.bf16.mxu0 %v844
  %925 = vmatpush1.bf16.msra.mxu0 %v843
  %926 = vmatprep.subr.bf16.mxu0 %v840
  %927 = vmatpush1.bf16.msra.mxu0 %v839
  %928 = vmatprep.subr.bf16.mxu0 %v836
  %929 = vmatpush1.bf16.msra.mxu0 %v835
  %930 = vmatprep.subr.bf16.mxu0 %v832
  %931 = vmatpush1.bf16.msra.mxu0 %v831
  %932 = vmatprep.subr.bf16.mxu0 %v828
  %933 = vmatpush1.bf16.msra.mxu0 %v827
  %934 = vmatprep.subr.bf16.mxu0 %v824
  %935 = vmatpush1.bf16.msra.mxu0 %v823
  %936 = vmatprep.subr.bf16.mxu0 %v820
  %937 = vmatpush1.bf16.msra.mxu0 %v819
  %938 = vmatprep.subr.bf16.mxu0 0
  %939 = vmatpush2.bf16.msra.mxu0 0
  %940 = vmatprep.subr.bf16.mxu0 0
  %941 = vmatpush2.bf16.msra.mxu0 0
  %942 = vmatprep.subr.bf16.mxu0 0
  %943 = vmatpush2.bf16.msra.mxu0 0
  %944 = vmatprep.subr.bf16.mxu0 0
  %945 = vmatpush2.bf16.msra.mxu0 0
  %946 = vmatprep.subr.bf16.mxu0 0
  %947 = vmatpush2.bf16.msra.mxu0 0
  %948 = vmatprep.subr.bf16.mxu0 0
  %949 = vmatpush2.bf16.msra.mxu0 0
  %950 = vmatprep.subr.bf16.mxu0 0
  %951 = vmatpush2.bf16.msra.mxu0 0
  %952 = vmatprep.subr.bf16.mxu0 0
  %953 = vmatpush2.bf16.msra.mxu0 0
  %954 = vmatprep.mubr.bf16.mxu0 0
  %955 = vmatmul.mubr.bf16.gmra.mxu0 %v688
  %v956 = vpop.f32.mrf.mxu0
  %v957 = vadd.f32 0.0, %v956
  %v958 = vpop.f32.mrf.mxu0
  %v959 = vadd.f32 0.0, %v958
  %v960 = vpop.f32.mrf.mxu0
  %v961 = vpop.f32.mrf.mxu0
  %962 = vdwg.mxu0
  %v967 = vcombine.low %v916, %v918
  %v968 = vcombine.low %v957, %v959
  %v970 = vunpack.c.l.s4 1983009808
  %v971 = vunpack.c.0.s8 %v970
  %v972 = vlaneseq
  %v973 = vshrl.u32 %v972, 7
  %v974 = vsub.s32 %v971, %v973
  %v975 = vrot.slane %v967, %v974
  %v977 = vunpack.c.l.s4 1983009808
  %v978 = vunpack.c.0.s8 %v977
  %v979 = vlaneseq
  %v980 = vshrl.u32 %v979, 7
  %v981 = vsub.s32 %v978, %v980
  %v982 = vrot.slane %v968, %v981
  %v983 = vcombine.low %v975, %v982
  %v985 = vadd.f32 %v687, %v983
  %v986 = vxor.u32 %v985, 2147483648
  %v987 = vmul.f32 %v986, 1.442695
  %v988 = vpow.pop %v987
  %v989 = vadd.f32 %v988, 1.0
  %v990 = vrcp.pop %v989
  %v991 = vmul.f32 1.0, %v990
  %v993 = vrot.slane %v985, 2
  %v995 = vxor.u32 %v993, 2147483648
  %v996 = vmul.f32 %v995, 1.442695
  %v997 = vpow.pop %v996
  %v998 = vadd.f32 %v997, 1.0
  %v999 = vrcp.pop %v998
  %v1000 = vmul.f32 1.0, %v999
  %v1001 = vrot.slane %v985, 4
  %v1003 = vtanh.pop %v1001
  %v1004 = vrot.slane %v985, 6
  %v1006 = vxor.u32 %v1004, 2147483648
  %v1007 = vmul.f32 %v1006, 1.442695
  %v1008 = vpow.pop %v1007
  %v1009 = vadd.f32 %v1008, 1.0
  %v1010 = vrcp.pop %v1009
  %v1011 = vmul.f32 1.0, %v1010
  %v1012 = vmul.f32 %v1000, %v681
  %v1013 = vmul.f32 %v991, %v1003
  %v1014 = vadd.f32 %v1012, %v1013
  %v1015 = vtanh.pop %v1014
  %v1016 = vmul.f32 %v1011, %v1015
  %s1017 = scalar_lea.vmem %s2, 4
  %1018 = vst [vmem:[%s1017] sm:$0x3] %v1016
  %s1019 = scalar_lea.vmem %s0, 24
  %v1020 = vld [vmem:[%s1019] sm:$0xff]
  %v1021 = vpack.c.bf16 %v1016, %v1016
  %v1022 = vld [vmem:[%s1] sm:$0xff]
  %v1023 = vld [vmem:[%s1 + $0x8] sm:$0xff]
  %v1024 = vld [vmem:[%s1 + $0x10] sm:$0xff]
  %v1025 = vld [vmem:[%s1 + $0x18] sm:$0xff]
  %v1026 = vld [vmem:[%s1 + $0x20] sm:$0xff]
  %v1027 = vld [vmem:[%s1 + $0x28] sm:$0xff]
  %v1028 = vld [vmem:[%s1 + $0x30] sm:$0xff]
  %v1029 = vld [vmem:[%s1 + $0x38] sm:$0xff]
  %v1030 = vld [vmem:[%s1 + $0x40] sm:$0xff]
  %v1031 = vld [vmem:[%s1 + $0x48] sm:$0xff]
  %v1032 = vld [vmem:[%s1 + $0x50] sm:$0xff]
  %v1033 = vld [vmem:[%s1 + $0x58] sm:$0xff]
  %v1034 = vld [vmem:[%s1 + $0x60] sm:$0xff]
  %v1035 = vld [vmem:[%s1 + $0x68] sm:$0xff]
  %v1036 = vld [vmem:[%s1 + $0x70] sm:$0xff]
  %v1037 = vld [vmem:[%s1 + $0x78] sm:$0xff]
  %v1038 = vld [vmem:[%s1 + $0x80] sm:$0xff]
  %v1039 = vld [vmem:[%s1 + $0x88] sm:$0xff]
  %v1040 = vld [vmem:[%s1 + $0x90] sm:$0xff]
  %v1041 = vld [vmem:[%s1 + $0x98] sm:$0xff]
  %v1042 = vld [vmem:[%s1 + $0xa0] sm:$0xff]
  %v1043 = vld [vmem:[%s1 + $0xa8] sm:$0xff]
  %v1044 = vld [vmem:[%s1 + $0xb0] sm:$0xff]
  %v1045 = vld [vmem:[%s1 + $0xb8] sm:$0xff]
  %v1046 = vld [vmem:[%s1 + $0xc0] sm:$0xff]
  %v1047 = vld [vmem:[%s1 + $0xc8] sm:$0xff]
  %v1048 = vld [vmem:[%s1 + $0xd0] sm:$0xff]
  %v1049 = vld [vmem:[%s1 + $0xd8] sm:$0xff]
  %v1050 = vld [vmem:[%s1 + $0xe0] sm:$0xff]
  %v1051 = vld [vmem:[%s1 + $0xe8] sm:$0xff]
  %v1052 = vld [vmem:[%s1 + $0xf0] sm:$0xff]
  %v1053 = vld [vmem:[%s1 + $0xf8] sm:$0xff]
  %v1086 = vunpack.c.l.b16 %v1022
  %v1087 = vunpack.c.h.b16 %v1022
  %v1088 = vunpack.c.l.b16 %v1023
  %v1089 = vunpack.c.h.b16 %v1023
  %v1090 = vunpack.c.l.b16 %v1024
  %v1091 = vunpack.c.h.b16 %v1024
  %v1092 = vunpack.c.l.b16 %v1025
  %v1093 = vunpack.c.h.b16 %v1025
  %v1094 = vunpack.c.l.b16 %v1026
  %v1095 = vunpack.c.h.b16 %v1026
  %v1096 = vunpack.c.l.b16 %v1027
  %v1097 = vunpack.c.h.b16 %v1027
  %v1098 = vunpack.c.l.b16 %v1028
  %v1099 = vunpack.c.h.b16 %v1028
  %v1100 = vunpack.c.l.b16 %v1029
  %v1101 = vunpack.c.h.b16 %v1029
  %v1102 = vunpack.c.l.b16 %v1030
  %v1103 = vunpack.c.h.b16 %v1030
  %v1104 = vunpack.c.l.b16 %v1031
  %v1105 = vunpack.c.h.b16 %v1031
  %v1106 = vunpack.c.l.b16 %v1032
  %v1107 = vunpack.c.h.b16 %v1032
  %v1108 = vunpack.c.l.b16 %v1033
  %v1109 = vunpack.c.h.b16 %v1033
  %v1110 = vunpack.c.l.b16 %v1034
  %v1111 = vunpack.c.h.b16 %v1034
  %v1112 = vunpack.c.l.b16 %v1035
  %v1113 = vunpack.c.h.b16 %v1035
  %v1114 = vunpack.c.l.b16 %v1036
  %v1115 = vunpack.c.h.b16 %v1036
  %v1116 = vunpack.c.l.b16 %v1037
  %v1117 = vunpack.c.h.b16 %v1037
  %v1118 = vunpack.c.l.b16 %v1038
  %v1119 = vunpack.c.h.b16 %v1038
  %v1120 = vunpack.c.l.b16 %v1039
  %v1121 = vunpack.c.h.b16 %v1039
  %v1122 = vunpack.c.l.b16 %v1040
  %v1123 = vunpack.c.h.b16 %v1040
  %v1124 = vunpack.c.l.b16 %v1041
  %v1125 = vunpack.c.h.b16 %v1041
  %v1126 = vunpack.c.l.b16 %v1042
  %v1127 = vunpack.c.h.b16 %v1042
  %v1128 = vunpack.c.l.b16 %v1043
  %v1129 = vunpack.c.h.b16 %v1043
  %v1130 = vunpack.c.l.b16 %v1044
  %v1131 = vunpack.c.h.b16 %v1044
  %v1132 = vunpack.c.l.b16 %v1045
  %v1133 = vunpack.c.h.b16 %v1045
  %v1134 = vunpack.c.l.b16 %v1046
  %v1135 = vunpack.c.h.b16 %v1046
  %v1136 = vunpack.c.l.b16 %v1047
  %v1137 = vunpack.c.h.b16 %v1047
  %v1138 = vunpack.c.l.b16 %v1048
  %v1139 = vunpack.c.h.b16 %v1048
  %v1140 = vunpack.c.l.b16 %v1049
  %v1141 = vunpack.c.h.b16 %v1049
  %v1142 = vunpack.c.l.b16 %v1050
  %v1143 = vunpack.c.h.b16 %v1050
  %v1144 = vunpack.c.l.b16 %v1051
  %v1145 = vunpack.c.h.b16 %v1051
  %v1146 = vunpack.c.l.b16 %v1052
  %v1147 = vunpack.c.h.b16 %v1052
  %v1148 = vunpack.c.l.b16 %v1053
  %v1149 = vunpack.c.h.b16 %v1053
  %v1150 = vpack.c.b16 %v1090, %v1086
  %v1151 = vpack.c.b16 %v1091, %v1087
  %v1152 = vpack.c.b16 %v1092, %v1088
  %v1153 = vpack.c.b16 %v1093, %v1089
  %v1154 = vpack.c.b16 %v1098, %v1094
  %v1155 = vpack.c.b16 %v1099, %v1095
  %v1156 = vpack.c.b16 %v1100, %v1096
  %v1157 = vpack.c.b16 %v1101, %v1097
  %v1158 = vpack.c.b16 %v1106, %v1102
  %v1159 = vpack.c.b16 %v1107, %v1103
  %v1160 = vpack.c.b16 %v1108, %v1104
  %v1161 = vpack.c.b16 %v1109, %v1105
  %v1162 = vpack.c.b16 %v1114, %v1110
  %v1163 = vpack.c.b16 %v1115, %v1111
  %v1164 = vpack.c.b16 %v1116, %v1112
  %v1165 = vpack.c.b16 %v1117, %v1113
  %v1166 = vpack.c.b16 %v1122, %v1118
  %v1167 = vpack.c.b16 %v1123, %v1119
  %v1168 = vpack.c.b16 %v1124, %v1120
  %v1169 = vpack.c.b16 %v1125, %v1121
  %v1170 = vpack.c.b16 %v1130, %v1126
  %v1171 = vpack.c.b16 %v1131, %v1127
  %v1172 = vpack.c.b16 %v1132, %v1128
  %v1173 = vpack.c.b16 %v1133, %v1129
  %v1174 = vpack.c.b16 %v1138, %v1134
  %v1175 = vpack.c.b16 %v1139, %v1135
  %v1176 = vpack.c.b16 %v1140, %v1136
  %v1177 = vpack.c.b16 %v1141, %v1137
  %v1178 = vpack.c.b16 %v1146, %v1142
  %v1179 = vpack.c.b16 %v1147, %v1143
  %v1180 = vpack.c.b16 %v1148, %v1144
  %v1181 = vpack.c.b16 %v1149, %v1145
  %1214 = vmatprep.subr.bf16.mxu0 %v1179
  %1215 = vmatpush1.bf16.msra.mxu0 %v1178
  %1216 = vmatprep.subr.bf16.mxu0 %v1175
  %1217 = vmatpush1.bf16.msra.mxu0 %v1174
  %1218 = vmatprep.subr.bf16.mxu0 %v1171
  %1219 = vmatpush1.bf16.msra.mxu0 %v1170
  %1220 = vmatprep.subr.bf16.mxu0 %v1167
  %1221 = vmatpush1.bf16.msra.mxu0 %v1166
  %1222 = vmatprep.subr.bf16.mxu0 %v1163
  %1223 = vmatpush1.bf16.msra.mxu0 %v1162
  %1224 = vmatprep.subr.bf16.mxu0 %v1159
  %1225 = vmatpush1.bf16.msra.mxu0 %v1158
  %1226 = vmatprep.subr.bf16.mxu0 %v1155
  %1227 = vmatpush1.bf16.msra.mxu0 %v1154
  %1228 = vmatprep.subr.bf16.mxu0 %v1151
  %1229 = vmatpush1.bf16.msra.mxu0 %v1150
  %1230 = vmatprep.subr.bf16.mxu0 0
  %1231 = vmatpush2.bf16.msra.mxu0 0
  %1232 = vmatprep.subr.bf16.mxu0 0
  %1233 = vmatpush2.bf16.msra.mxu0 0
  %1234 = vmatprep.subr.bf16.mxu0 0
  %1235 = vmatpush2.bf16.msra.mxu0 0
  %1236 = vmatprep.subr.bf16.mxu0 0
  %1237 = vmatpush2.bf16.msra.mxu0 0
  %1238 = vmatprep.subr.bf16.mxu0 0
  %1239 = vmatpush2.bf16.msra.mxu0 0
  %1240 = vmatprep.subr.bf16.mxu0 0
  %1241 = vmatpush2.bf16.msra.mxu0 0
  %1242 = vmatprep.subr.bf16.mxu0 0
  %1243 = vmatpush2.bf16.msra.mxu0 0
  %1244 = vmatprep.subr.bf16.mxu0 0
  %1245 = vmatpush2.bf16.msra.mxu0 0
  %1246 = vmatprep.mubr.bf16.mxu0 0
  %1247 = vmatmul.mubr.bf16.gmra.mxu0 %v1021
  %v1248 = vpop.f32.mrf.mxu0
  %v1249 = vadd.f32 0.0, %v1248
  %v1250 = vpop.f32.mrf.mxu0
  %v1251 = vadd.f32 0.0, %v1250
  %v1252 = vpop.f32.mrf.mxu0
  %v1253 = vpop.f32.mrf.mxu0
  %1254 = vdwg.mxu0
  %1255 = vmatprep.subr.bf16.mxu0 %v1181
  %1256 = vmatpush1.bf16.msra.mxu0 %v1180
  %1257 = vmatprep.subr.bf16.mxu0 %v1177
  %1258 = vmatpush1.bf16.msra.mxu0 %v1176
  %1259 = vmatprep.subr.bf16.mxu0 %v1173
  %1260 = vmatpush1.bf16.msra.mxu0 %v1172
  %1261 = vmatprep.subr.bf16.mxu0 %v1169
  %1262 = vmatpush1.bf16.msra.mxu0 %v1168
  %1263 = vmatprep.subr.bf16.mxu0 %v1165
  %1264 = vmatpush1.bf16.msra.mxu0 %v1164
  %1265 = vmatprep.subr.bf16.mxu0 %v1161
  %1266 = vmatpush1.bf16.msra.mxu0 %v1160
  %1267 = vmatprep.subr.bf16.mxu0 %v1157
  %1268 = vmatpush1.bf16.msra.mxu0 %v1156
  %1269 = vmatprep.subr.bf16.mxu0 %v1153
  %1270 = vmatpush1.bf16.msra.mxu0 %v1152
  %1271 = vmatprep.subr.bf16.mxu0 0
  %1272 = vmatpush2.bf16.msra.mxu0 0
  %1273 = vmatprep.subr.bf16.mxu0 0
  %1274 = vmatpush2.bf16.msra.mxu0 0
  %1275 = vmatprep.subr.bf16.mxu0 0
  %1276 = vmatpush2.bf16.msra.mxu0 0
  %1277 = vmatprep.subr.bf16.mxu0 0
  %1278 = vmatpush2.bf16.msra.mxu0 0
  %1279 = vmatprep.subr.bf16.mxu0 0
  %1280 = vmatpush2.bf16.msra.mxu0 0
  %1281 = vmatprep.subr.bf16.mxu0 0
  %1282 = vmatpush2.bf16.msra.mxu0 0
  %1283 = vmatprep.subr.bf16.mxu0 0
  %1284 = vmatpush2.bf16.msra.mxu0 0
  %1285 = vmatprep.subr.bf16.mxu0 0
  %1286 = vmatpush2.bf16.msra.mxu0 0
  %1287 = vmatprep.mubr.bf16.mxu0 0
  %1288 = vmatmul.mubr.bf16.gmra.mxu0 %v1021
  %v1289 = vpop.f32.mrf.mxu0
  %v1290 = vadd.f32 0.0, %v1289
  %v1291 = vpop.f32.mrf.mxu0
  %v1292 = vadd.f32 0.0, %v1291
  %v1293 = vpop.f32.mrf.mxu0
  %v1294 = vpop.f32.mrf.mxu0
  %1295 = vdwg.mxu0
  %v1300 = vcombine.low %v1249, %v1251
  %v1301 = vcombine.low %v1290, %v1292
  %v1303 = vunpack.c.l.s4 1983009808
  %v1304 = vunpack.c.0.s8 %v1303
  %v1305 = vlaneseq
  %v1306 = vshrl.u32 %v1305, 7
  %v1307 = vsub.s32 %v1304, %v1306
  %v1308 = vrot.slane %v1300, %v1307
  %v1310 = vunpack.c.l.s4 1983009808
  %v1311 = vunpack.c.0.s8 %v1310
  %v1312 = vlaneseq
  %v1313 = vshrl.u32 %v1312, 7
  %v1314 = vsub.s32 %v1311, %v1313
  %v1315 = vrot.slane %v1301, %v1314
  %v1316 = vcombine.low %v1308, %v1315
  %v1318 = vadd.f32 %v1020, %v1316
  %v1319 = vxor.u32 %v1318, 2147483648
  %v1320 = vmul.f32 %v1319, 1.442695
  %v1321 = vpow.pop %v1320
  %v1322 = vadd.f32 %v1321, 1.0
  %v1323 = vrcp.pop %v1322
  %v1324 = vmul.f32 1.0, %v1323
  %v1326 = vrot.slane %v1318, 2
  %v1328 = vxor.u32 %v1326, 2147483648
  %v1329 = vmul.f32 %v1328, 1.442695
  %v1330 = vpow.pop %v1329
  %v1331 = vadd.f32 %v1330, 1.0
  %v1332 = vrcp.pop %v1331
  %v1333 = vmul.f32 1.0, %v1332
  %v1334 = vrot.slane %v1318, 4
  %v1336 = vtanh.pop %v1334
  %v1337 = vrot.slane %v1318, 6
  %v1339 = vxor.u32 %v1337, 2147483648
  %v1340 = vmul.f32 %v1339, 1.442695
  %v1341 = vpow.pop %v1340
  %v1342 = vadd.f32 %v1341, 1.0
  %v1343 = vrcp.pop %v1342
  %v1344 = vmul.f32 1.0, %v1343
  %v1345 = vmul.f32 %v1333, %v1014
  %v1346 = vmul.f32 %v1324, %v1336
  %v1347 = vadd.f32 %v1345, %v1346
  %v1348 = vtanh.pop %v1347
  %v1349 = vmul.f32 %v1344, %v1348
  %s1350 = scalar_lea.vmem %s2, 6
  %1351 = vst [vmem:[%s1350] sm:$0x3] %v1349
  %s1352 = scalar_lea.vmem %s0, 32
  %v1353 = vld [vmem:[%s1352] sm:$0xff]
  %v1354 = vpack.c.bf16 %v1349, %v1349
  %v1355 = vld [vmem:[%s1] sm:$0xff]
  %v1356 = vld [vmem:[%s1 + $0x8] sm:$0xff]
  %v1357 = vld [vmem:[%s1 + $0x10] sm:$0xff]
  %v1358 = vld [vmem:[%s1 + $0x18] sm:$0xff]
  %v1359 = vld [vmem:[%s1 + $0x20] sm:$0xff]
  %v1360 = vld [vmem:[%s1 + $0x28] sm:$0xff]
  %v1361 = vld [vmem:[%s1 + $0x30] sm:$0xff]
  %v1362 = vld [vmem:[%s1 + $0x38] sm:$0xff]
  %v1363 = vld [vmem:[%s1 + $0x40] sm:$0xff]
  %v1364 = vld [vmem:[%s1 + $0x48] sm:$0xff]
  %v1365 = vld [vmem:[%s1 + $0x50] sm:$0xff]
  %v1366 = vld [vmem:[%s1 + $0x58] sm:$0xff]
  %v1367 = vld [vmem:[%s1 + $0x60] sm:$0xff]
  %v1368 = vld [vmem:[%s1 + $0x68] sm:$0xff]
  %v1369 = vld [vmem:[%s1 + $0x70] sm:$0xff]
  %v1370 = vld [vmem:[%s1 + $0x78] sm:$0xff]
  %v1371 = vld [vmem:[%s1 + $0x80] sm:$0xff]
  %v1372 = vld [vmem:[%s1 + $0x88] sm:$0xff]
  %v1373 = vld [vmem:[%s1 + $0x90] sm:$0xff]
  %v1374 = vld [vmem:[%s1 + $0x98] sm:$0xff]
  %v1375 = vld [vmem:[%s1 + $0xa0] sm:$0xff]
  %v1376 = vld [vmem:[%s1 + $0xa8] sm:$0xff]
  %v1377 = vld [vmem:[%s1 + $0xb0] sm:$0xff]
  %v1378 = vld [vmem:[%s1 + $0xb8] sm:$0xff]
  %v1379 = vld [vmem:[%s1 + $0xc0] sm:$0xff]
  %v1380 = vld [vmem:[%s1 + $0xc8] sm:$0xff]
  %v1381 = vld [vmem:[%s1 + $0xd0] sm:$0xff]
  %v1382 = vld [vmem:[%s1 + $0xd8] sm:$0xff]
  %v1383 = vld [vmem:[%s1 + $0xe0] sm:$0xff]
  %v1384 = vld [vmem:[%s1 + $0xe8] sm:$0xff]
  %v1385 = vld [vmem:[%s1 + $0xf0] sm:$0xff]
  %v1386 = vld [vmem:[%s1 + $0xf8] sm:$0xff]
  %v1419 = vunpack.c.l.b16 %v1355
  %v1420 = vunpack.c.h.b16 %v1355
  %v1421 = vunpack.c.l.b16 %v1356
  %v1422 = vunpack.c.h.b16 %v1356
  %v1423 = vunpack.c.l.b16 %v1357
  %v1424 = vunpack.c.h.b16 %v1357
  %v1425 = vunpack.c.l.b16 %v1358
  %v1426 = vunpack.c.h.b16 %v1358
  %v1427 = vunpack.c.l.b16 %v1359
  %v1428 = vunpack.c.h.b16 %v1359
  %v1429 = vunpack.c.l.b16 %v1360
  %v1430 = vunpack.c.h.b16 %v1360
  %v1431 = vunpack.c.l.b16 %v1361
  %v1432 = vunpack.c.h.b16 %v1361
  %v1433 = vunpack.c.l.b16 %v1362
  %v1434 = vunpack.c.h.b16 %v1362
  %v1435 = vunpack.c.l.b16 %v1363
  %v1436 = vunpack.c.h.b16 %v1363
  %v1437 = vunpack.c.l.b16 %v1364
  %v1438 = vunpack.c.h.b16 %v1364
  %v1439 = vunpack.c.l.b16 %v1365
  %v1440 = vunpack.c.h.b16 %v1365
  %v1441 = vunpack.c.l.b16 %v1366
  %v1442 = vunpack.c.h.b16 %v1366
  %v1443 = vunpack.c.l.b16 %v1367
  %v1444 = vunpack.c.h.b16 %v1367
  %v1445 = vunpack.c.l.b16 %v1368
  %v1446 = vunpack.c.h.b16 %v1368
  %v1447 = vunpack.c.l.b16 %v1369
  %v1448 = vunpack.c.h.b16 %v1369
  %v1449 = vunpack.c.l.b16 %v1370
  %v1450 = vunpack.c.h.b16 %v1370
  %v1451 = vunpack.c.l.b16 %v1371
  %v1452 = vunpack.c.h.b16 %v1371
  %v1453 = vunpack.c.l.b16 %v1372
  %v1454 = vunpack.c.h.b16 %v1372
  %v1455 = vunpack.c.l.b16 %v1373
  %v1456 = vunpack.c.h.b16 %v1373
  %v1457 = vunpack.c.l.b16 %v1374
  %v1458 = vunpack.c.h.b16 %v1374
  %v1459 = vunpack.c.l.b16 %v1375
  %v1460 = vunpack.c.h.b16 %v1375
  %v1461 = vunpack.c.l.b16 %v1376
  %v1462 = vunpack.c.h.b16 %v1376
  %v1463 = vunpack.c.l.b16 %v1377
  %v1464 = vunpack.c.h.b16 %v1377
  %v1465 = vunpack.c.l.b16 %v1378
  %v1466 = vunpack.c.h.b16 %v1378
  %v1467 = vunpack.c.l.b16 %v1379
  %v1468 = vunpack.c.h.b16 %v1379
  %v1469 = vunpack.c.l.b16 %v1380
  %v1470 = vunpack.c.h.b16 %v1380
  %v1471 = vunpack.c.l.b16 %v1381
  %v1472 = vunpack.c.h.b16 %v1381
  %v1473 = vunpack.c.l.b16 %v1382
  %v1474 = vunpack.c.h.b16 %v1382
  %v1475 = vunpack.c.l.b16 %v1383
  %v1476 = vunpack.c.h.b16 %v1383
  %v1477 = vunpack.c.l.b16 %v1384
  %v1478 = vunpack.c.h.b16 %v1384
  %v1479 = vunpack.c.l.b16 %v1385
  %v1480 = vunpack.c.h.b16 %v1385
  %v1481 = vunpack.c.l.b16 %v1386
  %v1482 = vunpack.c.h.b16 %v1386
  %v1483 = vpack.c.b16 %v1423, %v1419
  %v1484 = vpack.c.b16 %v1424, %v1420
  %v1485 = vpack.c.b16 %v1425, %v1421
  %v1486 = vpack.c.b16 %v1426, %v1422
  %v1487 = vpack.c.b16 %v1431, %v1427
  %v1488 = vpack.c.b16 %v1432, %v1428
  %v1489 = vpack.c.b16 %v1433, %v1429
  %v1490 = vpack.c.b16 %v1434, %v1430
  %v1491 = vpack.c.b16 %v1439, %v1435
  %v1492 = vpack.c.b16 %v1440, %v1436
  %v1493 = vpack.c.b16 %v1441, %v1437
  %v1494 = vpack.c.b16 %v1442, %v1438
  %v1495 = vpack.c.b16 %v1447, %v1443
  %v1496 = vpack.c.b16 %v1448, %v1444
  %v1497 = vpack.c.b16 %v1449, %v1445
  %v1498 = vpack.c.b16 %v1450, %v1446
  %v1499 = vpack.c.b16 %v1455, %v1451
  %v1500 = vpack.c.b16 %v1456, %v1452
  %v1501 = vpack.c.b16 %v1457, %v1453
  %v1502 = vpack.c.b16 %v1458, %v1454
  %v1503 = vpack.c.b16 %v1463, %v1459
  %v1504 = vpack.c.b16 %v1464, %v1460
  %v1505 = vpack.c.b16 %v1465, %v1461
  %v1506 = vpack.c.b16 %v1466, %v1462
  %v1507 = vpack.c.b16 %v1471, %v1467
  %v1508 = vpack.c.b16 %v1472, %v1468
  %v1509 = vpack.c.b16 %v1473, %v1469
  %v1510 = vpack.c.b16 %v1474, %v1470
  %v1511 = vpack.c.b16 %v1479, %v1475
  %v1512 = vpack.c.b16 %v1480, %v1476
  %v1513 = vpack.c.b16 %v1481, %v1477
  %v1514 = vpack.c.b16 %v1482, %v1478
  %1547 = vmatprep.subr.bf16.mxu0 %v1512
  %1548 = vmatpush1.bf16.msra.mxu0 %v1511
  %1549 = vmatprep.subr.bf16.mxu0 %v1508
  %1550 = vmatpush1.bf16.msra.mxu0 %v1507
  %1551 = vmatprep.subr.bf16.mxu0 %v1504
  %1552 = vmatpush1.bf16.msra.mxu0 %v1503
  %1553 = vmatprep.subr.bf16.mxu0 %v1500
  %1554 = vmatpush1.bf16.msra.mxu0 %v1499
  %1555 = vmatprep.subr.bf16.mxu0 %v1496
  %1556 = vmatpush1.bf16.msra.mxu0 %v1495
  %1557 = vmatprep.subr.bf16.mxu0 %v1492
  %1558 = vmatpush1.bf16.msra.mxu0 %v1491
  %1559 = vmatprep.subr.bf16.mxu0 %v1488
  %1560 = vmatpush1.bf16.msra.mxu0 %v1487
  %1561 = vmatprep.subr.bf16.mxu0 %v1484
  %1562 = vmatpush1.bf16.msra.mxu0 %v1483
  %1563 = vmatprep.subr.bf16.mxu0 0
  %1564 = vmatpush2.bf16.msra.mxu0 0
  %1565 = vmatprep.subr.bf16.mxu0 0
  %1566 = vmatpush2.bf16.msra.mxu0 0
  %1567 = vmatprep.subr.bf16.mxu0 0
  %1568 = vmatpush2.bf16.msra.mxu0 0
  %1569 = vmatprep.subr.bf16.mxu0 0
  %1570 = vmatpush2.bf16.msra.mxu0 0
  %1571 = vmatprep.subr.bf16.mxu0 0
  %1572 = vmatpush2.bf16.msra.mxu0 0
  %1573 = vmatprep.subr.bf16.mxu0 0
  %1574 = vmatpush2.bf16.msra.mxu0 0
  %1575 = vmatprep.subr.bf16.mxu0 0
  %1576 = vmatpush2.bf16.msra.mxu0 0
  %1577 = vmatprep.subr.bf16.mxu0 0
  %1578 = vmatpush2.bf16.msra.mxu0 0
  %1579 = vmatprep.mubr.bf16.mxu0 0
  %1580 = vmatmul.mubr.bf16.gmra.mxu0 %v1354
  %v1581 = vpop.f32.mrf.mxu0
  %v1582 = vadd.f32 0.0, %v1581
  %v1583 = vpop.f32.mrf.mxu0
  %v1584 = vadd.f32 0.0, %v1583
  %v1585 = vpop.f32.mrf.mxu0
  %v1586 = vpop.f32.mrf.mxu0
  %1587 = vdwg.mxu0
  %1588 = vmatprep.subr.bf16.mxu0 %v1514
  %1589 = vmatpush1.bf16.msra.mxu0 %v1513
  %1590 = vmatprep.subr.bf16.mxu0 %v1510
  %1591 = vmatpush1.bf16.msra.mxu0 %v1509
  %1592 = vmatprep.subr.bf16.mxu0 %v1506
  %1593 = vmatpush1.bf16.msra.mxu0 %v1505
  %1594 = vmatprep.subr.bf16.mxu0 %v1502
  %1595 = vmatpush1.bf16.msra.mxu0 %v1501
  %1596 = vmatprep.subr.bf16.mxu0 %v1498
  %1597 = vmatpush1.bf16.msra.mxu0 %v1497
  %1598 = vmatprep.subr.bf16.mxu0 %v1494
  %1599 = vmatpush1.bf16.msra.mxu0 %v1493
  %1600 = vmatprep.subr.bf16.mxu0 %v1490
  %1601 = vmatpush1.bf16.msra.mxu0 %v1489
  %1602 = vmatprep.subr.bf16.mxu0 %v1486
  %1603 = vmatpush1.bf16.msra.mxu0 %v1485
  %1604 = vmatprep.subr.bf16.mxu0 0
  %1605 = vmatpush2.bf16.msra.mxu0 0
  %1606 = vmatprep.subr.bf16.mxu0 0
  %1607 = vmatpush2.bf16.msra.mxu0 0
  %1608 = vmatprep.subr.bf16.mxu0 0
  %1609 = vmatpush2.bf16.msra.mxu0 0
  %1610 = vmatprep.subr.bf16.mxu0 0
  %1611 = vmatpush2.bf16.msra.mxu0 0
  %1612 = vmatprep.subr.bf16.mxu0 0
  %1613 = vmatpush2.bf16.msra.mxu0 0
  %1614 = vmatprep.subr.bf16.mxu0 0
  %1615 = vmatpush2.bf16.msra.mxu0 0
  %1616 = vmatprep.subr.bf16.mxu0 0
  %1617 = vmatpush2.bf16.msra.mxu0 0
  %1618 = vmatprep.subr.bf16.mxu0 0
  %1619 = vmatpush2.bf16.msra.mxu0 0
  %1620 = vmatprep.mubr.bf16.mxu0 0
  %1621 = vmatmul.mubr.bf16.gmra.mxu0 %v1354
  %v1622 = vpop.f32.mrf.mxu0
  %v1623 = vadd.f32 0.0, %v1622
  %v1624 = vpop.f32.mrf.mxu0
  %v1625 = vadd.f32 0.0, %v1624
  %v1626 = vpop.f32.mrf.mxu0
  %v1627 = vpop.f32.mrf.mxu0
  %1628 = vdwg.mxu0
  %v1633 = vcombine.low %v1582, %v1584
  %v1634 = vcombine.low %v1623, %v1625
  %v1636 = vunpack.c.l.s4 1983009808
  %v1637 = vunpack.c.0.s8 %v1636
  %v1638 = vlaneseq
  %v1639 = vshrl.u32 %v1638, 7
  %v1640 = vsub.s32 %v1637, %v1639
  %v1641 = vrot.slane %v1633, %v1640
  %v1643 = vunpack.c.l.s4 1983009808
  %v1644 = vunpack.c.0.s8 %v1643
  %v1645 = vlaneseq
  %v1646 = vshrl.u32 %v1645, 7
  %v1647 = vsub.s32 %v1644, %v1646
  %v1648 = vrot.slane %v1634, %v1647
  %v1649 = vcombine.low %v1641, %v1648
  %v1651 = vadd.f32 %v1353, %v1649
  %v1652 = vxor.u32 %v1651, 2147483648
  %v1653 = vmul.f32 %v1652, 1.442695
  %v1654 = vpow.pop %v1653
  %v1655 = vadd.f32 %v1654, 1.0
  %v1656 = vrcp.pop %v1655
  %v1657 = vmul.f32 1.0, %v1656
  %v1659 = vrot.slane %v1651, 2
  %v1661 = vxor.u32 %v1659, 2147483648
  %v1662 = vmul.f32 %v1661, 1.442695
  %v1663 = vpow.pop %v1662
  %v1664 = vadd.f32 %v1663, 1.0
  %v1665 = vrcp.pop %v1664
  %v1666 = vmul.f32 1.0, %v1665
  %v1667 = vrot.slane %v1651, 4
  %v1669 = vtanh.pop %v1667
  %v1670 = vrot.slane %v1651, 6
  %v1672 = vxor.u32 %v1670, 2147483648
  %v1673 = vmul.f32 %v1672, 1.442695
  %v1674 = vpow.pop %v1673
  %v1675 = vadd.f32 %v1674, 1.0
  %v1676 = vrcp.pop %v1675
  %v1677 = vmul.f32 1.0, %v1676
  %v1678 = vmul.f32 %v1666, %v1347
  %v1679 = vmul.f32 %v1657, %v1669
  %v1680 = vadd.f32 %v1678, %v1679
  %v1681 = vtanh.pop %v1680
  %v1682 = vmul.f32 %v1677, %v1681
  %s1683 = scalar_lea.vmem %s2, 8
  %1684 = vst [vmem:[%s1683] sm:$0x3] %v1682
  %s1685 = scalar_lea.vmem %s0, 40
  %v1686 = vld [vmem:[%s1685] sm:$0xff]
  %v1687 = vpack.c.bf16 %v1682, %v1682
  %v1688 = vld [vmem:[%s1] sm:$0xff]
  %v1689 = vld [vmem:[%s1 + $0x8] sm:$0xff]
  %v1690 = vld [vmem:[%s1 + $0x10] sm:$0xff]
  %v1691 = vld [vmem:[%s1 + $0x18] sm:$0xff]
  %v1692 = vld [vmem:[%s1 + $0x20] sm:$0xff]
  %v1693 = vld [vmem:[%s1 + $0x28] sm:$0xff]
  %v1694 = vld [vmem:[%s1 + $0x30] sm:$0xff]
  %v1695 = vld [vmem:[%s1 + $0x38] sm:$0xff]
  %v1696 = vld [vmem:[%s1 + $0x40] sm:$0xff]
  %v1697 = vld [vmem:[%s1 + $0x48] sm:$0xff]
  %v1698 = vld [vmem:[%s1 + $0x50] sm:$0xff]
  %v1699 = vld [vmem:[%s1 + $0x58] sm:$0xff]
  %v1700 = vld [vmem:[%s1 + $0x60] sm:$0xff]
  %v1701 = vld [vmem:[%s1 + $0x68] sm:$0xff]
  %v1702 = vld [vmem:[%s1 + $0x70] sm:$0xff]
  %v1703 = vld [vmem:[%s1 + $0x78] sm:$0xff]
  %v1704 = vld [vmem:[%s1 + $0x80] sm:$0xff]
  %v1705 = vld [vmem:[%s1 + $0x88] sm:$0xff]
  %v1706 = vld [vmem:[%s1 + $0x90] sm:$0xff]
  %v1707 = vld [vmem:[%s1 + $0x98] sm:$0xff]
  %v1708 = vld [vmem:[%s1 + $0xa0] sm:$0xff]
  %v1709 = vld [vmem:[%s1 + $0xa8] sm:$0xff]
  %v1710 = vld [vmem:[%s1 + $0xb0] sm:$0xff]
  %v1711 = vld [vmem:[%s1 + $0xb8] sm:$0xff]
  %v1712 = vld [vmem:[%s1 + $0xc0] sm:$0xff]
  %v1713 = vld [vmem:[%s1 + $0xc8] sm:$0xff]
  %v1714 = vld [vmem:[%s1 + $0xd0] sm:$0xff]
  %v1715 = vld [vmem:[%s1 + $0xd8] sm:$0xff]
  %v1716 = vld [vmem:[%s1 + $0xe0] sm:$0xff]
  %v1717 = vld [vmem:[%s1 + $0xe8] sm:$0xff]
  %v1718 = vld [vmem:[%s1 + $0xf0] sm:$0xff]
  %v1719 = vld [vmem:[%s1 + $0xf8] sm:$0xff]
  %v1752 = vunpack.c.l.b16 %v1688
  %v1753 = vunpack.c.h.b16 %v1688
  %v1754 = vunpack.c.l.b16 %v1689
  %v1755 = vunpack.c.h.b16 %v1689
  %v1756 = vunpack.c.l.b16 %v1690
  %v1757 = vunpack.c.h.b16 %v1690
  %v1758 = vunpack.c.l.b16 %v1691
  %v1759 = vunpack.c.h.b16 %v1691
  %v1760 = vunpack.c.l.b16 %v1692
  %v1761 = vunpack.c.h.b16 %v1692
  %v1762 = vunpack.c.l.b16 %v1693
  %v1763 = vunpack.c.h.b16 %v1693
  %v1764 = vunpack.c.l.b16 %v1694
  %v1765 = vunpack.c.h.b16 %v1694
  %v1766 = vunpack.c.l.b16 %v1695
  %v1767 = vunpack.c.h.b16 %v1695
  %v1768 = vunpack.c.l.b16 %v1696
  %v1769 = vunpack.c.h.b16 %v1696
  %v1770 = vunpack.c.l.b16 %v1697
  %v1771 = vunpack.c.h.b16 %v1697
  %v1772 = vunpack.c.l.b16 %v1698
  %v1773 = vunpack.c.h.b16 %v1698
  %v1774 = vunpack.c.l.b16 %v1699
  %v1775 = vunpack.c.h.b16 %v1699
  %v1776 = vunpack.c.l.b16 %v1700
  %v1777 = vunpack.c.h.b16 %v1700
  %v1778 = vunpack.c.l.b16 %v1701
  %v1779 = vunpack.c.h.b16 %v1701
  %v1780 = vunpack.c.l.b16 %v1702
  %v1781 = vunpack.c.h.b16 %v1702
  %v1782 = vunpack.c.l.b16 %v1703
  %v1783 = vunpack.c.h.b16 %v1703
  %v1784 = vunpack.c.l.b16 %v1704
  %v1785 = vunpack.c.h.b16 %v1704
  %v1786 = vunpack.c.l.b16 %v1705
  %v1787 = vunpack.c.h.b16 %v1705
  %v1788 = vunpack.c.l.b16 %v1706
  %v1789 = vunpack.c.h.b16 %v1706
  %v1790 = vunpack.c.l.b16 %v1707
  %v1791 = vunpack.c.h.b16 %v1707
  %v1792 = vunpack.c.l.b16 %v1708
  %v1793 = vunpack.c.h.b16 %v1708
  %v1794 = vunpack.c.l.b16 %v1709
  %v1795 = vunpack.c.h.b16 %v1709
  %v1796 = vunpack.c.l.b16 %v1710
  %v1797 = vunpack.c.h.b16 %v1710
  %v1798 = vunpack.c.l.b16 %v1711
  %v1799 = vunpack.c.h.b16 %v1711
  %v1800 = vunpack.c.l.b16 %v1712
  %v1801 = vunpack.c.h.b16 %v1712
  %v1802 = vunpack.c.l.b16 %v1713
  %v1803 = vunpack.c.h.b16 %v1713
  %v1804 = vunpack.c.l.b16 %v1714
  %v1805 = vunpack.c.h.b16 %v1714
  %v1806 = vunpack.c.l.b16 %v1715
  %v1807 = vunpack.c.h.b16 %v1715
  %v1808 = vunpack.c.l.b16 %v1716
  %v1809 = vunpack.c.h.b16 %v1716
  %v1810 = vunpack.c.l.b16 %v1717
  %v1811 = vunpack.c.h.b16 %v1717
  %v1812 = vunpack.c.l.b16 %v1718
  %v1813 = vunpack.c.h.b16 %v1718
  %v1814 = vunpack.c.l.b16 %v1719
  %v1815 = vunpack.c.h.b16 %v1719
  %v1816 = vpack.c.b16 %v1756, %v1752
  %v1817 = vpack.c.b16 %v1757, %v1753
  %v1818 = vpack.c.b16 %v1758, %v1754
  %v1819 = vpack.c.b16 %v1759, %v1755
  %v1820 = vpack.c.b16 %v1764, %v1760
  %v1821 = vpack.c.b16 %v1765, %v1761
  %v1822 = vpack.c.b16 %v1766, %v1762
  %v1823 = vpack.c.b16 %v1767, %v1763
  %v1824 = vpack.c.b16 %v1772, %v1768
  %v1825 = vpack.c.b16 %v1773, %v1769
  %v1826 = vpack.c.b16 %v1774, %v1770
  %v1827 = vpack.c.b16 %v1775, %v1771
  %v1828 = vpack.c.b16 %v1780, %v1776
  %v1829 = vpack.c.b16 %v1781, %v1777
  %v1830 = vpack.c.b16 %v1782, %v1778
  %v1831 = vpack.c.b16 %v1783, %v1779
  %v1832 = vpack.c.b16 %v1788, %v1784
  %v1833 = vpack.c.b16 %v1789, %v1785
  %v1834 = vpack.c.b16 %v1790, %v1786
  %v1835 = vpack.c.b16 %v1791, %v1787
  %v1836 = vpack.c.b16 %v1796, %v1792
  %v1837 = vpack.c.b16 %v1797, %v1793
  %v1838 = vpack.c.b16 %v1798, %v1794
  %v1839 = vpack.c.b16 %v1799, %v1795
  %v1840 = vpack.c.b16 %v1804, %v1800
  %v1841 = vpack.c.b16 %v1805, %v1801
  %v1842 = vpack.c.b16 %v1806, %v1802
  %v1843 = vpack.c.b16 %v1807, %v1803
  %v1844 = vpack.c.b16 %v1812, %v1808
  %v1845 = vpack.c.b16 %v1813, %v1809
  %v1846 = vpack.c.b16 %v1814, %v1810
  %v1847 = vpack.c.b16 %v1815, %v1811
  %1880 = vmatprep.subr.bf16.mxu0 %v1845
  %1881 = vmatpush1.bf16.msra.mxu0 %v1844
  %1882 = vmatprep.subr.bf16.mxu0 %v1841
  %1883 = vmatpush1.bf16.msra.mxu0 %v1840
  %1884 = vmatprep.subr.bf16.mxu0 %v1837
  %1885 = vmatpush1.bf16.msra.mxu0 %v1836
  %1886 = vmatprep.subr.bf16.mxu0 %v1833
  %1887 = vmatpush1.bf16.msra.mxu0 %v1832
  %1888 = vmatprep.subr.bf16.mxu0 %v1829
  %1889 = vmatpush1.bf16.msra.mxu0 %v1828
  %1890 = vmatprep.subr.bf16.mxu0 %v1825
  %1891 = vmatpush1.bf16.msra.mxu0 %v1824
  %1892 = vmatprep.subr.bf16.mxu0 %v1821
  %1893 = vmatpush1.bf16.msra.mxu0 %v1820
  %1894 = vmatprep.subr.bf16.mxu0 %v1817
  %1895 = vmatpush1.bf16.msra.mxu0 %v1816
  %1896 = vmatprep.subr.bf16.mxu0 0
  %1897 = vmatpush2.bf16.msra.mxu0 0
  %1898 = vmatprep.subr.bf16.mxu0 0
  %1899 = vmatpush2.bf16.msra.mxu0 0
  %1900 = vmatprep.subr.bf16.mxu0 0
  %1901 = vmatpush2.bf16.msra.mxu0 0
  %1902 = vmatprep.subr.bf16.mxu0 0
  %1903 = vmatpush2.bf16.msra.mxu0 0
  %1904 = vmatprep.subr.bf16.mxu0 0
  %1905 = vmatpush2.bf16.msra.mxu0 0
  %1906 = vmatprep.subr.bf16.mxu0 0
  %1907 = vmatpush2.bf16.msra.mxu0 0
  %1908 = vmatprep.subr.bf16.mxu0 0
  %1909 = vmatpush2.bf16.msra.mxu0 0
  %1910 = vmatprep.subr.bf16.mxu0 0
  %1911 = vmatpush2.bf16.msra.mxu0 0
  %1912 = vmatprep.mubr.bf16.mxu0 0
  %1913 = vmatmul.mubr.bf16.gmra.mxu0 %v1687
  %v1914 = vpop.f32.mrf.mxu0
  %v1915 = vadd.f32 0.0, %v1914
  %v1916 = vpop.f32.mrf.mxu0
  %v1917 = vadd.f32 0.0, %v1916
  %v1918 = vpop.f32.mrf.mxu0
  %v1919 = vpop.f32.mrf.mxu0
  %1920 = vdwg.mxu0
  %1921 = vmatprep.subr.bf16.mxu0 %v1847
  %1922 = vmatpush1.bf16.msra.mxu0 %v1846
  %1923 = vmatprep.subr.bf16.mxu0 %v1843
  %1924 = vmatpush1.bf16.msra.mxu0 %v1842
  %1925 = vmatprep.subr.bf16.mxu0 %v1839
  %1926 = vmatpush1.bf16.msra.mxu0 %v1838
  %1927 = vmatprep.subr.bf16.mxu0 %v1835
  %1928 = vmatpush1.bf16.msra.mxu0 %v1834
  %1929 = vmatprep.subr.bf16.mxu0 %v1831
  %1930 = vmatpush1.bf16.msra.mxu0 %v1830
  %1931 = vmatprep.subr.bf16.mxu0 %v1827
  %1932 = vmatpush1.bf16.msra.mxu0 %v1826
  %1933 = vmatprep.subr.bf16.mxu0 %v1823
  %1934 = vmatpush1.bf16.msra.mxu0 %v1822
  %1935 = vmatprep.subr.bf16.mxu0 %v1819
  %1936 = vmatpush1.bf16.msra.mxu0 %v1818
  %1937 = vmatprep.subr.bf16.mxu0 0
  %1938 = vmatpush2.bf16.msra.mxu0 0
  %1939 = vmatprep.subr.bf16.mxu0 0
  %1940 = vmatpush2.bf16.msra.mxu0 0
  %1941 = vmatprep.subr.bf16.mxu0 0
  %1942 = vmatpush2.bf16.msra.mxu0 0
  %1943 = vmatprep.subr.bf16.mxu0 0
  %1944 = vmatpush2.bf16.msra.mxu0 0
  %1945 = vmatprep.subr.bf16.mxu0 0
  %1946 = vmatpush2.bf16.msra.mxu0 0
  %1947 = vmatprep.subr.bf16.mxu0 0
  %1948 = vmatpush2.bf16.msra.mxu0 0
  %1949 = vmatprep.subr.bf16.mxu0 0
  %1950 = vmatpush2.bf16.msra.mxu0 0
  %1951 = vmatprep.subr.bf16.mxu0 0
  %1952 = vmatpush2.bf16.msra.mxu0 0
  %1953 = vmatprep.mubr.bf16.mxu0 0
  %1954 = vmatmul.mubr.bf16.gmra.mxu0 %v1687
  %v1955 = vpop.f32.mrf.mxu0
  %v1956 = vadd.f32 0.0, %v1955
  %v1957 = vpop.f32.mrf.mxu0
  %v1958 = vadd.f32 0.0, %v1957
  %v1959 = vpop.f32.mrf.mxu0
  %v1960 = vpop.f32.mrf.mxu0
  %1961 = vdwg.mxu0
  %v1966 = vcombine.low %v1915, %v1917
  %v1967 = vcombine.low %v1956, %v1958
  %v1969 = vunpack.c.l.s4 1983009808
  %v1970 = vunpack.c.0.s8 %v1969
  %v1971 = vlaneseq
  %v1972 = vshrl.u32 %v1971, 7
  %v1973 = vsub.s32 %v1970, %v1972
  %v1974 = vrot.slane %v1966, %v1973
  %v1976 = vunpack.c.l.s4 1983009808
  %v1977 = vunpack.c.0.s8 %v1976
  %v1978 = vlaneseq
  %v1979 = vshrl.u32 %v1978, 7
  %v1980 = vsub.s32 %v1977, %v1979
  %v1981 = vrot.slane %v1967, %v1980
  %v1982 = vcombine.low %v1974, %v1981
  %v1984 = vadd.f32 %v1686, %v1982
  %v1985 = vxor.u32 %v1984, 2147483648
  %v1986 = vmul.f32 %v1985, 1.442695
  %v1987 = vpow.pop %v1986
  %v1988 = vadd.f32 %v1987, 1.0
  %v1989 = vrcp.pop %v1988
  %v1990 = vmul.f32 1.0, %v1989
  %v1992 = vrot.slane %v1984, 2
  %v1994 = vxor.u32 %v1992, 2147483648
  %v1995 = vmul.f32 %v1994, 1.442695
  %v1996 = vpow.pop %v1995
  %v1997 = vadd.f32 %v1996, 1.0
  %v1998 = vrcp.pop %v1997
  %v1999 = vmul.f32 1.0, %v1998
  %v2000 = vrot.slane %v1984, 4
  %v2002 = vtanh.pop %v2000
  %v2003 = vrot.slane %v1984, 6
  %v2005 = vxor.u32 %v2003, 2147483648
  %v2006 = vmul.f32 %v2005, 1.442695
  %v2007 = vpow.pop %v2006
  %v2008 = vadd.f32 %v2007, 1.0
  %v2009 = vrcp.pop %v2008
  %v2010 = vmul.f32 1.0, %v2009
  %v2011 = vmul.f32 %v1999, %v1680
  %v2012 = vmul.f32 %v1990, %v2002
  %v2013 = vadd.f32 %v2011, %v2012
  %v2014 = vtanh.pop %v2013
  %v2015 = vmul.f32 %v2010, %v2014
  %s2016 = scalar_lea.vmem %s2, 10
  %2017 = vst [vmem:[%s2016] sm:$0x3] %v2015
  %s2018 = scalar_lea.vmem %s0, 48
  %v2019 = vld [vmem:[%s2018] sm:$0xff]
  %v2020 = vpack.c.bf16 %v2015, %v2015
  %v2021 = vld [vmem:[%s1] sm:$0xff]
  %v2022 = vld [vmem:[%s1 + $0x8] sm:$0xff]
  %v2023 = vld [vmem:[%s1 + $0x10] sm:$0xff]
  %v2024 = vld [vmem:[%s1 + $0x18] sm:$0xff]
  %v2025 = vld [vmem:[%s1 + $0x20] sm:$0xff]
  %v2026 = vld [vmem:[%s1 + $0x28] sm:$0xff]
  %v2027 = vld [vmem:[%s1 + $0x30] sm:$0xff]
  %v2028 = vld [vmem:[%s1 + $0x38] sm:$0xff]
  %v2029 = vld [vmem:[%s1 + $0x40] sm:$0xff]
  %v2030 = vld [vmem:[%s1 + $0x48] sm:$0xff]
  %v2031 = vld [vmem:[%s1 + $0x50] sm:$0xff]
  %v2032 = vld [vmem:[%s1 + $0x58] sm:$0xff]
  %v2033 = vld [vmem:[%s1 + $0x60] sm:$0xff]
  %v2034 = vld [vmem:[%s1 + $0x68] sm:$0xff]
  %v2035 = vld [vmem:[%s1 + $0x70] sm:$0xff]
  %v2036 = vld [vmem:[%s1 + $0x78] sm:$0xff]
  %v2037 = vld [vmem:[%s1 + $0x80] sm:$0xff]
  %v2038 = vld [vmem:[%s1 + $0x88] sm:$0xff]
  %v2039 = vld [vmem:[%s1 + $0x90] sm:$0xff]
  %v2040 = vld [vmem:[%s1 + $0x98] sm:$0xff]
  %v2041 = vld [vmem:[%s1 + $0xa0] sm:$0xff]
  %v2042 = vld [vmem:[%s1 + $0xa8] sm:$0xff]
  %v2043 = vld [vmem:[%s1 + $0xb0] sm:$0xff]
  %v2044 = vld [vmem:[%s1 + $0xb8] sm:$0xff]
  %v2045 = vld [vmem:[%s1 + $0xc0] sm:$0xff]
  %v2046 = vld [vmem:[%s1 + $0xc8] sm:$0xff]
  %v2047 = vld [vmem:[%s1 + $0xd0] sm:$0xff]
  %v2048 = vld [vmem:[%s1 + $0xd8] sm:$0xff]
  %v2049 = vld [vmem:[%s1 + $0xe0] sm:$0xff]
  %v2050 = vld [vmem:[%s1 + $0xe8] sm:$0xff]
  %v2051 = vld [vmem:[%s1 + $0xf0] sm:$0xff]
  %v2052 = vld [vmem:[%s1 + $0xf8] sm:$0xff]
  %v2085 = vunpack.c.l.b16 %v2021
  %v2086 = vunpack.c.h.b16 %v2021
  %v2087 = vunpack.c.l.b16 %v2022
  %v2088 = vunpack.c.h.b16 %v2022
  %v2089 = vunpack.c.l.b16 %v2023
  %v2090 = vunpack.c.h.b16 %v2023
  %v2091 = vunpack.c.l.b16 %v2024
  %v2092 = vunpack.c.h.b16 %v2024
  %v2093 = vunpack.c.l.b16 %v2025
  %v2094 = vunpack.c.h.b16 %v2025
  %v2095 = vunpack.c.l.b16 %v2026
  %v2096 = vunpack.c.h.b16 %v2026
  %v2097 = vunpack.c.l.b16 %v2027
  %v2098 = vunpack.c.h.b16 %v2027
  %v2099 = vunpack.c.l.b16 %v2028
  %v2100 = vunpack.c.h.b16 %v2028
  %v2101 = vunpack.c.l.b16 %v2029
  %v2102 = vunpack.c.h.b16 %v2029
  %v2103 = vunpack.c.l.b16 %v2030
  %v2104 = vunpack.c.h.b16 %v2030
  %v2105 = vunpack.c.l.b16 %v2031
  %v2106 = vunpack.c.h.b16 %v2031
  %v2107 = vunpack.c.l.b16 %v2032
  %v2108 = vunpack.c.h.b16 %v2032
  %v2109 = vunpack.c.l.b16 %v2033
  %v2110 = vunpack.c.h.b16 %v2033
  %v2111 = vunpack.c.l.b16 %v2034
  %v2112 = vunpack.c.h.b16 %v2034
  %v2113 = vunpack.c.l.b16 %v2035
  %v2114 = vunpack.c.h.b16 %v2035
  %v2115 = vunpack.c.l.b16 %v2036
  %v2116 = vunpack.c.h.b16 %v2036
  %v2117 = vunpack.c.l.b16 %v2037
  %v2118 = vunpack.c.h.b16 %v2037
  %v2119 = vunpack.c.l.b16 %v2038
  %v2120 = vunpack.c.h.b16 %v2038
  %v2121 = vunpack.c.l.b16 %v2039
  %v2122 = vunpack.c.h.b16 %v2039
  %v2123 = vunpack.c.l.b16 %v2040
  %v2124 = vunpack.c.h.b16 %v2040
  %v2125 = vunpack.c.l.b16 %v2041
  %v2126 = vunpack.c.h.b16 %v2041
  %v2127 = vunpack.c.l.b16 %v2042
  %v2128 = vunpack.c.h.b16 %v2042
  %v2129 = vunpack.c.l.b16 %v2043
  %v2130 = vunpack.c.h.b16 %v2043
  %v2131 = vunpack.c.l.b16 %v2044
  %v2132 = vunpack.c.h.b16 %v2044
  %v2133 = vunpack.c.l.b16 %v2045
  %v2134 = vunpack.c.h.b16 %v2045
  %v2135 = vunpack.c.l.b16 %v2046
  %v2136 = vunpack.c.h.b16 %v2046
  %v2137 = vunpack.c.l.b16 %v2047
  %v2138 = vunpack.c.h.b16 %v2047
  %v2139 = vunpack.c.l.b16 %v2048
  %v2140 = vunpack.c.h.b16 %v2048
  %v2141 = vunpack.c.l.b16 %v2049
  %v2142 = vunpack.c.h.b16 %v2049
  %v2143 = vunpack.c.l.b16 %v2050
  %v2144 = vunpack.c.h.b16 %v2050
  %v2145 = vunpack.c.l.b16 %v2051
  %v2146 = vunpack.c.h.b16 %v2051
  %v2147 = vunpack.c.l.b16 %v2052
  %v2148 = vunpack.c.h.b16 %v2052
  %v2149 = vpack.c.b16 %v2089, %v2085
  %v2150 = vpack.c.b16 %v2090, %v2086
  %v2151 = vpack.c.b16 %v2091, %v2087
  %v2152 = vpack.c.b16 %v2092, %v2088
  %v2153 = vpack.c.b16 %v2097, %v2093
  %v2154 = vpack.c.b16 %v2098, %v2094
  %v2155 = vpack.c.b16 %v2099, %v2095
  %v2156 = vpack.c.b16 %v2100, %v2096
  %v2157 = vpack.c.b16 %v2105, %v2101
  %v2158 = vpack.c.b16 %v2106, %v2102
  %v2159 = vpack.c.b16 %v2107, %v2103
  %v2160 = vpack.c.b16 %v2108, %v2104
  %v2161 = vpack.c.b16 %v2113, %v2109
  %v2162 = vpack.c.b16 %v2114, %v2110
  %v2163 = vpack.c.b16 %v2115, %v2111
  %v2164 = vpack.c.b16 %v2116, %v2112
  %v2165 = vpack.c.b16 %v2121, %v2117
  %v2166 = vpack.c.b16 %v2122, %v2118
  %v2167 = vpack.c.b16 %v2123, %v2119
  %v2168 = vpack.c.b16 %v2124, %v2120
  %v2169 = vpack.c.b16 %v2129, %v2125
  %v2170 = vpack.c.b16 %v2130, %v2126
  %v2171 = vpack.c.b16 %v2131, %v2127
  %v2172 = vpack.c.b16 %v2132, %v2128
  %v2173 = vpack.c.b16 %v2137, %v2133
  %v2174 = vpack.c.b16 %v2138, %v2134
  %v2175 = vpack.c.b16 %v2139, %v2135
  %v2176 = vpack.c.b16 %v2140, %v2136
  %v2177 = vpack.c.b16 %v2145, %v2141
  %v2178 = vpack.c.b16 %v2146, %v2142
  %v2179 = vpack.c.b16 %v2147, %v2143
  %v2180 = vpack.c.b16 %v2148, %v2144
  %2213 = vmatprep.subr.bf16.mxu0 %v2178
  %2214 = vmatpush1.bf16.msra.mxu0 %v2177
  %2215 = vmatprep.subr.bf16.mxu0 %v2174
  %2216 = vmatpush1.bf16.msra.mxu0 %v2173
  %2217 = vmatprep.subr.bf16.mxu0 %v2170
  %2218 = vmatpush1.bf16.msra.mxu0 %v2169
  %2219 = vmatprep.subr.bf16.mxu0 %v2166
  %2220 = vmatpush1.bf16.msra.mxu0 %v2165
  %2221 = vmatprep.subr.bf16.mxu0 %v2162
  %2222 = vmatpush1.bf16.msra.mxu0 %v2161
  %2223 = vmatprep.subr.bf16.mxu0 %v2158
  %2224 = vmatpush1.bf16.msra.mxu0 %v2157
  %2225 = vmatprep.subr.bf16.mxu0 %v2154
  %2226 = vmatpush1.bf16.msra.mxu0 %v2153
  %2227 = vmatprep.subr.bf16.mxu0 %v2150
  %2228 = vmatpush1.bf16.msra.mxu0 %v2149
  %2229 = vmatprep.subr.bf16.mxu0 0
  %2230 = vmatpush2.bf16.msra.mxu0 0
  %2231 = vmatprep.subr.bf16.mxu0 0
  %2232 = vmatpush2.bf16.msra.mxu0 0
  %2233 = vmatprep.subr.bf16.mxu0 0
  %2234 = vmatpush2.bf16.msra.mxu0 0
  %2235 = vmatprep.subr.bf16.mxu0 0
  %2236 = vmatpush2.bf16.msra.mxu0 0
  %2237 = vmatprep.subr.bf16.mxu0 0
  %2238 = vmatpush2.bf16.msra.mxu0 0
  %2239 = vmatprep.subr.bf16.mxu0 0
  %2240 = vmatpush2.bf16.msra.mxu0 0
  %2241 = vmatprep.subr.bf16.mxu0 0
  %2242 = vmatpush2.bf16.msra.mxu0 0
  %2243 = vmatprep.subr.bf16.mxu0 0
  %2244 = vmatpush2.bf16.msra.mxu0 0
  %2245 = vmatprep.mubr.bf16.mxu0 0
  %2246 = vmatmul.mubr.bf16.gmra.mxu0 %v2020
  %v2247 = vpop.f32.mrf.mxu0
  %v2248 = vadd.f32 0.0, %v2247
  %v2249 = vpop.f32.mrf.mxu0
  %v2250 = vadd.f32 0.0, %v2249
  %v2251 = vpop.f32.mrf.mxu0
  %v2252 = vpop.f32.mrf.mxu0
  %2253 = vdwg.mxu0
  %2254 = vmatprep.subr.bf16.mxu0 %v2180
  %2255 = vmatpush1.bf16.msra.mxu0 %v2179
  %2256 = vmatprep.subr.bf16.mxu0 %v2176
  %2257 = vmatpush1.bf16.msra.mxu0 %v2175
  %2258 = vmatprep.subr.bf16.mxu0 %v2172
  %2259 = vmatpush1.bf16.msra.mxu0 %v2171
  %2260 = vmatprep.subr.bf16.mxu0 %v2168
  %2261 = vmatpush1.bf16.msra.mxu0 %v2167
  %2262 = vmatprep.subr.bf16.mxu0 %v2164
  %2263 = vmatpush1.bf16.msra.mxu0 %v2163
  %2264 = vmatprep.subr.bf16.mxu0 %v2160
  %2265 = vmatpush1.bf16.msra.mxu0 %v2159
  %2266 = vmatprep.subr.bf16.mxu0 %v2156
  %2267 = vmatpush1.bf16.msra.mxu0 %v2155
  %2268 = vmatprep.subr.bf16.mxu0 %v2152
  %2269 = vmatpush1.bf16.msra.mxu0 %v2151
  %2270 = vmatprep.subr.bf16.mxu0 0
  %2271 = vmatpush2.bf16.msra.mxu0 0
  %2272 = vmatprep.subr.bf16.mxu0 0
  %2273 = vmatpush2.bf16.msra.mxu0 0
  %2274 = vmatprep.subr.bf16.mxu0 0
  %2275 = vmatpush2.bf16.msra.mxu0 0
  %2276 = vmatprep.subr.bf16.mxu0 0
  %2277 = vmatpush2.bf16.msra.mxu0 0
  %2278 = vmatprep.subr.bf16.mxu0 0
  %2279 = vmatpush2.bf16.msra.mxu0 0
  %2280 = vmatprep.subr.bf16.mxu0 0
  %2281 = vmatpush2.bf16.msra.mxu0 0
  %2282 = vmatprep.subr.bf16.mxu0 0
  %2283 = vmatpush2.bf16.msra.mxu0 0
  %2284 = vmatprep.subr.bf16.mxu0 0
  %2285 = vmatpush2.bf16.msra.mxu0 0
  %2286 = vmatprep.mubr.bf16.mxu0 0
  %2287 = vmatmul.mubr.bf16.gmra.mxu0 %v2020
  %v2288 = vpop.f32.mrf.mxu0
  %v2289 = vadd.f32 0.0, %v2288
  %v2290 = vpop.f32.mrf.mxu0
  %v2291 = vadd.f32 0.0, %v2290
  %v2292 = vpop.f32.mrf.mxu0
  %v2293 = vpop.f32.mrf.mxu0
  %2294 = vdwg.mxu0
  %v2299 = vcombine.low %v2248, %v2250
  %v2300 = vcombine.low %v2289, %v2291
  %v2302 = vunpack.c.l.s4 1983009808
  %v2303 = vunpack.c.0.s8 %v2302
  %v2304 = vlaneseq
  %v2305 = vshrl.u32 %v2304, 7
  %v2306 = vsub.s32 %v2303, %v2305
  %v2307 = vrot.slane %v2299, %v2306
  %v2309 = vunpack.c.l.s4 1983009808
  %v2310 = vunpack.c.0.s8 %v2309
  %v2311 = vlaneseq
  %v2312 = vshrl.u32 %v2311, 7
  %v2313 = vsub.s32 %v2310, %v2312
  %v2314 = vrot.slane %v2300, %v2313
  %v2315 = vcombine.low %v2307, %v2314
  %v2317 = vadd.f32 %v2019, %v2315
  %v2318 = vxor.u32 %v2317, 2147483648
  %v2319 = vmul.f32 %v2318, 1.442695
  %v2320 = vpow.pop %v2319
  %v2321 = vadd.f32 %v2320, 1.0
  %v2322 = vrcp.pop %v2321
  %v2323 = vmul.f32 1.0, %v2322
  %v2325 = vrot.slane %v2317, 2
  %v2327 = vxor.u32 %v2325, 2147483648
  %v2328 = vmul.f32 %v2327, 1.442695
  %v2329 = vpow.pop %v2328
  %v2330 = vadd.f32 %v2329, 1.0
  %v2331 = vrcp.pop %v2330
  %v2332 = vmul.f32 1.0, %v2331
  %v2333 = vrot.slane %v2317, 4
  %v2335 = vtanh.pop %v2333
  %v2336 = vrot.slane %v2317, 6
  %v2338 = vxor.u32 %v2336, 2147483648
  %v2339 = vmul.f32 %v2338, 1.442695
  %v2340 = vpow.pop %v2339
  %v2341 = vadd.f32 %v2340, 1.0
  %v2342 = vrcp.pop %v2341
  %v2343 = vmul.f32 1.0, %v2342
  %v2344 = vmul.f32 %v2332, %v2013
  %v2345 = vmul.f32 %v2323, %v2335
  %v2346 = vadd.f32 %v2344, %v2345
  %v2347 = vtanh.pop %v2346
  %v2348 = vmul.f32 %v2343, %v2347
  %s2349 = scalar_lea.vmem %s2, 12
  %2350 = vst [vmem:[%s2349] sm:$0x3] %v2348
  %s2351 = scalar_lea.vmem %s0, 56
  %v2352 = vld [vmem:[%s2351] sm:$0xff]
  %v2353 = vpack.c.bf16 %v2348, %v2348
  %v2354 = vld [vmem:[%s1] sm:$0xff]
  %v2355 = vld [vmem:[%s1 + $0x8] sm:$0xff]
  %v2356 = vld [vmem:[%s1 + $0x10] sm:$0xff]
  %v2357 = vld [vmem:[%s1 + $0x18] sm:$0xff]
  %v2358 = vld [vmem:[%s1 + $0x20] sm:$0xff]
  %v2359 = vld [vmem:[%s1 + $0x28] sm:$0xff]
  %v2360 = vld [vmem:[%s1 + $0x30] sm:$0xff]
  %v2361 = vld [vmem:[%s1 + $0x38] sm:$0xff]
  %v2362 = vld [vmem:[%s1 + $0x40] sm:$0xff]
  %v2363 = vld [vmem:[%s1 + $0x48] sm:$0xff]
  %v2364 = vld [vmem:[%s1 + $0x50] sm:$0xff]
  %v2365 = vld [vmem:[%s1 + $0x58] sm:$0xff]
  %v2366 = vld [vmem:[%s1 + $0x60] sm:$0xff]
  %v2367 = vld [vmem:[%s1 + $0x68] sm:$0xff]
  %v2368 = vld [vmem:[%s1 + $0x70] sm:$0xff]
  %v2369 = vld [vmem:[%s1 + $0x78] sm:$0xff]
  %v2370 = vld [vmem:[%s1 + $0x80] sm:$0xff]
  %v2371 = vld [vmem:[%s1 + $0x88] sm:$0xff]
  %v2372 = vld [vmem:[%s1 + $0x90] sm:$0xff]
  %v2373 = vld [vmem:[%s1 + $0x98] sm:$0xff]
  %v2374 = vld [vmem:[%s1 + $0xa0] sm:$0xff]
  %v2375 = vld [vmem:[%s1 + $0xa8] sm:$0xff]
  %v2376 = vld [vmem:[%s1 + $0xb0] sm:$0xff]
  %v2377 = vld [vmem:[%s1 + $0xb8] sm:$0xff]
  %v2378 = vld [vmem:[%s1 + $0xc0] sm:$0xff]
  %v2379 = vld [vmem:[%s1 + $0xc8] sm:$0xff]
  %v2380 = vld [vmem:[%s1 + $0xd0] sm:$0xff]
  %v2381 = vld [vmem:[%s1 + $0xd8] sm:$0xff]
  %v2382 = vld [vmem:[%s1 + $0xe0] sm:$0xff]
  %v2383 = vld [vmem:[%s1 + $0xe8] sm:$0xff]
  %v2384 = vld [vmem:[%s1 + $0xf0] sm:$0xff]
  %v2385 = vld [vmem:[%s1 + $0xf8] sm:$0xff]
  %v2418 = vunpack.c.l.b16 %v2354
  %v2419 = vunpack.c.h.b16 %v2354
  %v2420 = vunpack.c.l.b16 %v2355
  %v2421 = vunpack.c.h.b16 %v2355
  %v2422 = vunpack.c.l.b16 %v2356
  %v2423 = vunpack.c.h.b16 %v2356
  %v2424 = vunpack.c.l.b16 %v2357
  %v2425 = vunpack.c.h.b16 %v2357
  %v2426 = vunpack.c.l.b16 %v2358
  %v2427 = vunpack.c.h.b16 %v2358
  %v2428 = vunpack.c.l.b16 %v2359
  %v2429 = vunpack.c.h.b16 %v2359
  %v2430 = vunpack.c.l.b16 %v2360
  %v2431 = vunpack.c.h.b16 %v2360
  %v2432 = vunpack.c.l.b16 %v2361
  %v2433 = vunpack.c.h.b16 %v2361
  %v2434 = vunpack.c.l.b16 %v2362
  %v2435 = vunpack.c.h.b16 %v2362
  %v2436 = vunpack.c.l.b16 %v2363
  %v2437 = vunpack.c.h.b16 %v2363
  %v2438 = vunpack.c.l.b16 %v2364
  %v2439 = vunpack.c.h.b16 %v2364
  %v2440 = vunpack.c.l.b16 %v2365
  %v2441 = vunpack.c.h.b16 %v2365
  %v2442 = vunpack.c.l.b16 %v2366
  %v2443 = vunpack.c.h.b16 %v2366
  %v2444 = vunpack.c.l.b16 %v2367
  %v2445 = vunpack.c.h.b16 %v2367
  %v2446 = vunpack.c.l.b16 %v2368
  %v2447 = vunpack.c.h.b16 %v2368
  %v2448 = vunpack.c.l.b16 %v2369
  %v2449 = vunpack.c.h.b16 %v2369
  %v2450 = vunpack.c.l.b16 %v2370
  %v2451 = vunpack.c.h.b16 %v2370
  %v2452 = vunpack.c.l.b16 %v2371
  %v2453 = vunpack.c.h.b16 %v2371
  %v2454 = vunpack.c.l.b16 %v2372
  %v2455 = vunpack.c.h.b16 %v2372
  %v2456 = vunpack.c.l.b16 %v2373
  %v2457 = vunpack.c.h.b16 %v2373
  %v2458 = vunpack.c.l.b16 %v2374
  %v2459 = vunpack.c.h.b16 %v2374
  %v2460 = vunpack.c.l.b16 %v2375
  %v2461 = vunpack.c.h.b16 %v2375
  %v2462 = vunpack.c.l.b16 %v2376
  %v2463 = vunpack.c.h.b16 %v2376
  %v2464 = vunpack.c.l.b16 %v2377
  %v2465 = vunpack.c.h.b16 %v2377
  %v2466 = vunpack.c.l.b16 %v2378
  %v2467 = vunpack.c.h.b16 %v2378
  %v2468 = vunpack.c.l.b16 %v2379
  %v2469 = vunpack.c.h.b16 %v2379
  %v2470 = vunpack.c.l.b16 %v2380
  %v2471 = vunpack.c.h.b16 %v2380
  %v2472 = vunpack.c.l.b16 %v2381
  %v2473 = vunpack.c.h.b16 %v2381
  %v2474 = vunpack.c.l.b16 %v2382
  %v2475 = vunpack.c.h.b16 %v2382
  %v2476 = vunpack.c.l.b16 %v2383
  %v2477 = vunpack.c.h.b16 %v2383
  %v2478 = vunpack.c.l.b16 %v2384
  %v2479 = vunpack.c.h.b16 %v2384
  %v2480 = vunpack.c.l.b16 %v2385
  %v2481 = vunpack.c.h.b16 %v2385
  %v2482 = vpack.c.b16 %v2422, %v2418
  %v2483 = vpack.c.b16 %v2423, %v2419
  %v2484 = vpack.c.b16 %v2424, %v2420
  %v2485 = vpack.c.b16 %v2425, %v2421
  %v2486 = vpack.c.b16 %v2430, %v2426
  %v2487 = vpack.c.b16 %v2431, %v2427
  %v2488 = vpack.c.b16 %v2432, %v2428
  %v2489 = vpack.c.b16 %v2433, %v2429
  %v2490 = vpack.c.b16 %v2438, %v2434
  %v2491 = vpack.c.b16 %v2439, %v2435
  %v2492 = vpack.c.b16 %v2440, %v2436
  %v2493 = vpack.c.b16 %v2441, %v2437
  %v2494 = vpack.c.b16 %v2446, %v2442
  %v2495 = vpack.c.b16 %v2447, %v2443
  %v2496 = vpack.c.b16 %v2448, %v2444
  %v2497 = vpack.c.b16 %v2449, %v2445
  %v2498 = vpack.c.b16 %v2454, %v2450
  %v2499 = vpack.c.b16 %v2455, %v2451
  %v2500 = vpack.c.b16 %v2456, %v2452
  %v2501 = vpack.c.b16 %v2457, %v2453
  %v2502 = vpack.c.b16 %v2462, %v2458
  %v2503 = vpack.c.b16 %v2463, %v2459
  %v2504 = vpack.c.b16 %v2464, %v2460
  %v2505 = vpack.c.b16 %v2465, %v2461
  %v2506 = vpack.c.b16 %v2470, %v2466
  %v2507 = vpack.c.b16 %v2471, %v2467
  %v2508 = vpack.c.b16 %v2472, %v2468
  %v2509 = vpack.c.b16 %v2473, %v2469
  %v2510 = vpack.c.b16 %v2478, %v2474
  %v2511 = vpack.c.b16 %v2479, %v2475
  %v2512 = vpack.c.b16 %v2480, %v2476
  %v2513 = vpack.c.b16 %v2481, %v2477
  %2546 = vmatprep.subr.bf16.mxu0 %v2511
  %2547 = vmatpush1.bf16.msra.mxu0 %v2510
  %2548 = vmatprep.subr.bf16.mxu0 %v2507
  %2549 = vmatpush1.bf16.msra.mxu0 %v2506
  %2550 = vmatprep.subr.bf16.mxu0 %v2503
  %2551 = vmatpush1.bf16.msra.mxu0 %v2502
  %2552 = vmatprep.subr.bf16.mxu0 %v2499
  %2553 = vmatpush1.bf16.msra.mxu0 %v2498
  %2554 = vmatprep.subr.bf16.mxu0 %v2495
  %2555 = vmatpush1.bf16.msra.mxu0 %v2494
  %2556 = vmatprep.subr.bf16.mxu0 %v2491
  %2557 = vmatpush1.bf16.msra.mxu0 %v2490
  %2558 = vmatprep.subr.bf16.mxu0 %v2487
  %2559 = vmatpush1.bf16.msra.mxu0 %v2486
  %2560 = vmatprep.subr.bf16.mxu0 %v2483
  %2561 = vmatpush1.bf16.msra.mxu0 %v2482
  %2562 = vmatprep.subr.bf16.mxu0 0
  %2563 = vmatpush2.bf16.msra.mxu0 0
  %2564 = vmatprep.subr.bf16.mxu0 0
  %2565 = vmatpush2.bf16.msra.mxu0 0
  %2566 = vmatprep.subr.bf16.mxu0 0
  %2567 = vmatpush2.bf16.msra.mxu0 0
  %2568 = vmatprep.subr.bf16.mxu0 0
  %2569 = vmatpush2.bf16.msra.mxu0 0
  %2570 = vmatprep.subr.bf16.mxu0 0
  %2571 = vmatpush2.bf16.msra.mxu0 0
  %2572 = vmatprep.subr.bf16.mxu0 0
  %2573 = vmatpush2.bf16.msra.mxu0 0
  %2574 = vmatprep.subr.bf16.mxu0 0
  %2575 = vmatpush2.bf16.msra.mxu0 0
  %2576 = vmatprep.subr.bf16.mxu0 0
  %2577 = vmatpush2.bf16.msra.mxu0 0
  %2578 = vmatprep.mubr.bf16.mxu0 0
  %2579 = vmatmul.mubr.bf16.gmra.mxu0 %v2353
  %v2580 = vpop.f32.mrf.mxu0
  %v2581 = vadd.f32 0.0, %v2580
  %v2582 = vpop.f32.mrf.mxu0
  %v2583 = vadd.f32 0.0, %v2582
  %v2584 = vpop.f32.mrf.mxu0
  %v2585 = vpop.f32.mrf.mxu0
  %2586 = vdwg.mxu0
  %2587 = vmatprep.subr.bf16.mxu0 %v2513
  %2588 = vmatpush1.bf16.msra.mxu0 %v2512
  %2589 = vmatprep.subr.bf16.mxu0 %v2509
  %2590 = vmatpush1.bf16.msra.mxu0 %v2508
  %2591 = vmatprep.subr.bf16.mxu0 %v2505
  %2592 = vmatpush1.bf16.msra.mxu0 %v2504
  %2593 = vmatprep.subr.bf16.mxu0 %v2501
  %2594 = vmatpush1.bf16.msra.mxu0 %v2500
  %2595 = vmatprep.subr.bf16.mxu0 %v2497
  %2596 = vmatpush1.bf16.msra.mxu0 %v2496
  %2597 = vmatprep.subr.bf16.mxu0 %v2493
  %2598 = vmatpush1.bf16.msra.mxu0 %v2492
  %2599 = vmatprep.subr.bf16.mxu0 %v2489
  %2600 = vmatpush1.bf16.msra.mxu0 %v2488
  %2601 = vmatprep.subr.bf16.mxu0 %v2485
  %2602 = vmatpush1.bf16.msra.mxu0 %v2484
  %2603 = vmatprep.subr.bf16.mxu0 0
  %2604 = vmatpush2.bf16.msra.mxu0 0
  %2605 = vmatprep.subr.bf16.mxu0 0
  %2606 = vmatpush2.bf16.msra.mxu0 0
  %2607 = vmatprep.subr.bf16.mxu0 0
  %2608 = vmatpush2.bf16.msra.mxu0 0
  %2609 = vmatprep.subr.bf16.mxu0 0
  %2610 = vmatpush2.bf16.msra.mxu0 0
  %2611 = vmatprep.subr.bf16.mxu0 0
  %2612 = vmatpush2.bf16.msra.mxu0 0
  %2613 = vmatprep.subr.bf16.mxu0 0
  %2614 = vmatpush2.bf16.msra.mxu0 0
  %2615 = vmatprep.subr.bf16.mxu0 0
  %2616 = vmatpush2.bf16.msra.mxu0 0
  %2617 = vmatprep.subr.bf16.mxu0 0
  %2618 = vmatpush2.bf16.msra.mxu0 0
  %2619 = vmatprep.mubr.bf16.mxu0 0
  %2620 = vmatmul.mubr.bf16.gmra.mxu0 %v2353
  %v2621 = vpop.f32.mrf.mxu0
  %v2622 = vadd.f32 0.0, %v2621
  %v2623 = vpop.f32.mrf.mxu0
  %v2624 = vadd.f32 0.0, %v2623
  %v2625 = vpop.f32.mrf.mxu0
  %v2626 = vpop.f32.mrf.mxu0
  %2627 = vdwg.mxu0
  %v2632 = vcombine.low %v2581, %v2583
  %v2633 = vcombine.low %v2622, %v2624
  %v2635 = vunpack.c.l.s4 1983009808
  %v2636 = vunpack.c.0.s8 %v2635
  %v2637 = vlaneseq
  %v2638 = vshrl.u32 %v2637, 7
  %v2639 = vsub.s32 %v2636, %v2638
  %v2640 = vrot.slane %v2632, %v2639
  %v2642 = vunpack.c.l.s4 1983009808
  %v2643 = vunpack.c.0.s8 %v2642
  %v2644 = vlaneseq
  %v2645 = vshrl.u32 %v2644, 7
  %v2646 = vsub.s32 %v2643, %v2645
  %v2647 = vrot.slane %v2633, %v2646
  %v2648 = vcombine.low %v2640, %v2647
  %v2650 = vadd.f32 %v2352, %v2648
  %v2651 = vxor.u32 %v2650, 2147483648
  %v2652 = vmul.f32 %v2651, 1.442695
  %v2653 = vpow.pop %v2652
  %v2654 = vadd.f32 %v2653, 1.0
  %v2655 = vrcp.pop %v2654
  %v2656 = vmul.f32 1.0, %v2655
  %v2658 = vrot.slane %v2650, 2
  %v2660 = vxor.u32 %v2658, 2147483648
  %v2661 = vmul.f32 %v2660, 1.442695
  %v2662 = vpow.pop %v2661
  %v2663 = vadd.f32 %v2662, 1.0
  %v2664 = vrcp.pop %v2663
  %v2665 = vmul.f32 1.0, %v2664
  %v2666 = vrot.slane %v2650, 4
  %v2668 = vtanh.pop %v2666
  %v2669 = vrot.slane %v2650, 6
  %v2671 = vxor.u32 %v2669, 2147483648
  %v2672 = vmul.f32 %v2671, 1.442695
  %v2673 = vpow.pop %v2672
  %v2674 = vadd.f32 %v2673, 1.0
  %v2675 = vrcp.pop %v2674
  %v2676 = vmul.f32 1.0, %v2675
  %v2677 = vmul.f32 %v2665, %v2346
  %v2678 = vmul.f32 %v2656, %v2668
  %v2679 = vadd.f32 %v2677, %v2678
  %v2680 = vtanh.pop %v2679
  %v2681 = vmul.f32 %v2676, %v2680
  %s2682 = scalar_lea.vmem %s2, 14
  %2683 = vst [vmem:[%s2682] sm:$0x3] %v2681
  %2684 = vst [vmem:[#allocation2] sm:$0x3] %v2681
  %2685 = vst [vmem:[#allocation3] sm:$0x3] %v2679
  %2686 = vst [vmem:[%s3] sm:$0x3] %v2679
  // Predicated region
  $region14: #{encoder_forward.1} parent=0 // pred_check
    _
  $region15: #{encoder_forward.1} parent=0 // pred_check_branch
    %2688 = sbr.rel (0) target = $region17
  $region16: #{encoder_forward.1} parent=0 // pred_region
    _
  $region17: #{encoder_forward.1} parent=0 // pred_fallthru
    _
  // Predicated region
  $region18: #{encoder_forward.1} parent=0 // pred_check
    _
  $region19: #{encoder_forward.1} parent=0 // pred_check_branch
    %2690 = sbr.rel (0) target = $region21
  $region20: #{encoder_forward.1} parent=0 // pred_region
    _
  $region21: #{encoder_forward.1} parent=0 // pred_fallthru
    _
  // Predicated region
  $region22: #{encoder_forward.1} parent=0 // pred_check
    _
  $region23: #{encoder_forward.1} parent=0 // pred_check_branch
    %2692 = sbr.rel (0) target = $region25
  $region24: #{encoder_forward.1} parent=0 // pred_region
    _
  $region25: #{encoder_forward.1} parent=0 // pred_fallthru
    _
  // Predicated region
  $region26: #{encoder_forward.1} parent=0 // pred_check
    _
  $region27: #{encoder_forward.1} parent=0 // pred_check_branch
    %2694 = sbr.rel (0) target = $region29
  $region28: #{encoder_forward.1} parent=0 // pred_region
    _
  $region29: #{encoder_forward.1} parent=0 // pred_fallthru
    _

</llo_original>
